<compile_context>
chip_gen: v7x
topology: tpu7x:2x2x1
jax: 0.10.0
libtpu: 0.0.40
codegen_flags: <defaults>
</compile_context>

<pallas_src>
import functools

import jax
import jax.numpy as jnp
from jax.experimental import pallas as pl
from jax.experimental.pallas import tpu as pltpu


def _round_up(x, m):
    return (x + m - 1) // m * m


def qmm_kernel(x_ref, wf_ref, wl_ref, b_ref, out_ref, xs_ref, *,
               Ho, Wop, Hh, C, Cp, Wo_true, inv_pool):
    """One grid step == one batch element.

    x_ref  : [1, 4*Hh, Wop+1, C] bf16  phase-split, zero-padded NHWC feature map
                                       (row block p*Hh holds parity phase p=ph*2+pw)
    wf_ref : [9*Cp, C2p]         bf16  fused-K conv weights
                                       (row k*Cp + c <-> tap k = kh*3+kw, channel c)
    wl_ref : [1, C2p]            f32   Linear(2C->1) weight row, zero padded
    b_ref  : [1]                 f32   Linear bias (SMEM scalar)
    out_ref: [1, 8, 128]         f32   quality score, broadcast lane-dense
    xs_ref : [P, 9*Cp]           bf16  VMEM scratch: staged fused-K operand
    """
    P = Ho * Wop

    # Keep the padded K columns exact zeros (they pair with zero weight rows,
    # but uninitialized VMEM could hold NaN bit patterns).  Compiled out when
    # C is a lane multiple (realistic UEIQI: C = 384 = 3*128).
    if Cp != C:
        xs_ref[...] = jnp.zeros_like(xs_ref)

    # Stage the 9 conv taps into one lane-aligned fused-K operand.  Each tap is
    # a static, unit-stride slice of the phase-decomposed block, so no im2col
    # tensor ever exists in HBM; the dw=1 sublane shift is absorbed into the
    # staging copy itself.
    for kh in range(3):
        for kw in range(3):
            ph, dh = kh % 2, kh // 2
            pw, dw = kw % 2, kw // 2
            row0 = (ph * 2 + pw) * Hh + dh
            k = kh * 3 + kw
            x_tap = x_ref[0, row0:row0 + Ho, dw:dw + Wop, :]      # [Ho, Wop, C]
            xs_ref[:, k * Cp:k * Cp + C] = x_tap.reshape(P, C)

    # Conv2d(C -> 2C, k=3, stride=2, pad=1, bias=False) as ONE MXU matmul over
    # K = 9*Cp; accumulation stays inside the MXU (f32), no 9x VMEM
    # read-modify-write of the accumulator.
    y = jnp.dot(xs_ref[...], wf_ref[...], preferred_element_type=jnp.float32)
    y = jnp.maximum(y, 0.0)                                       # ReLU, f32 (v5e-safe)

    # AdaptiveAvgPool2d(1) + Flatten + Linear(2C->1) fused on the VPU:
    #   score = (1/(Ho*Wo)) * sum_{p,c} ReLU(y)[p, c] * wl[c] + b
    # (padded output channels have zero conv weight AND zero wl -> contribute 0).
    yw = y * wl_ref[...]                                          # [P, C2p] f32
    if Wop != Wo_true:
        # Padded output columns have receptive fields that can touch real
        # pixels, so they must be masked out of the global-average pool.
        wo_idx = jax.lax.broadcasted_iota(jnp.int32, (P, 1), 0) % Wop
        yw = jnp.where(wo_idx < Wo_true, yw, 0.0)
    s = jnp.sum(yw, axis=0, keepdims=True)                        # [1, C2p]
    s = jnp.sum(s, axis=1, keepdims=True)                         # [1, 1]
    score = s * inv_pool + b_ref[0]                               # [1, 1]

    # Lane-dense unmasked store (wrapper picks element [b, 0, 0]).
    out_ref[...] = jnp.broadcast_to(score[:, :, None],
                                    out_ref.shape).astype(out_ref.dtype)


def qmm_forward(f, w_conv, w_lin, b_lin):
    """QMM forward: f is [B, C, H, W] (NCHW), returns [B, 1] quality scores."""
    B, C, H, W = f.shape
    C2 = w_conv.shape[0]
    assert w_conv.shape == (C2, C, 3, 3) and C2 == 2 * C

    Ho = (H - 1) // 2 + 1            # conv output size (k=3, s=2, p=1)
    Wo = (W - 1) // 2 + 1
    Wop = _round_up(Wo, 8)           # sublane-aligned output width (free reshapes)
    Hh, Wh = Ho + 1, Wop + 1         # per-parity-phase spatial extents
    Cp = _round_up(C, 128)           # lane-aligned per-tap K stride
    C2p = _round_up(C2, 128)         # lane-padded conv output channels
    P = Ho * Wop

    # bf16 FIRST, then NCHW -> zero-padded NHWC -> stride-2 space-to-depth
    # ("phase") split: padded row h' = 2*hh + ph -> phase (ph, pw) plane [hh, wh].
    # Same total bytes as the feature map (1x HBM traffic, no im2col), and the
    # prologue transposes move half the bytes compared to f32.
    xt = jnp.transpose(f.astype(jnp.bfloat16), (0, 2, 3, 1))             # [B,H,W,C]
    xp = jnp.pad(xt, ((0, 0),
                      (1, 2 * Hh - 1 - H),
                      (1, 2 * Wh - 1 - W),
                      (0, 0)))                                           # [B,2Hh,2Wh,C]
    xph = xp.reshape(B, Hh, 2, Wh, 2, C).transpose(0, 2, 4, 1, 3, 5)     # [B,2,2,Hh,Wh,C]
    xph = xph.reshape(B, 4 * Hh, Wh, C)

    # Conv weight [2C, C, 3, 3] -> fused-K matrix [9*Cp, C2p]
    # (row k*Cp + c  <->  tap k = kh*3 + kw, input channel c).
    wf = jnp.transpose(w_conv, (2, 3, 1, 0)).reshape(9, C, C2)
    wf = jnp.pad(wf, ((0, 0), (0, Cp - C), (0, C2p - C2)))
    wf = wf.reshape(9 * Cp, C2p).astype(jnp.bfloat16)
    wl = jnp.pad(w_lin.astype(jnp.float32), ((0, 0), (0, C2p - C2)))     # [1, C2p]
    bl = b_lin.reshape(1).astype(jnp.float32)

    kernel = functools.partial(qmm_kernel, Ho=Ho, Wop=Wop, Hh=Hh, C=C, Cp=Cp,
                               Wo_true=Wo, inv_pool=1.0 / (Ho * Wo))

    cost = pl.CostEstimate(
        flops=2 * B * Ho * Wo * 9 * C * C2 + 2 * B * Ho * Wo * C2,
        transcendentals=0,
        bytes_accessed=int(xph.size) * 2 + int(wf.size) * 2
                       + int(wl.size) * 4 + B * 8 * 128 * 4,
    )

    out = pl.pallas_call(
        kernel,
        out_shape=jax.ShapeDtypeStruct((B, 8, 128), jnp.float32),
        grid=(B,),
        in_specs=[
            pl.BlockSpec((1, 4 * Hh, Wh, C), lambda b: (b, 0, 0, 0)),
            # Constant weight blocks: single-buffered so they don't cost 2x VMEM.
            pl.BlockSpec((9 * Cp, C2p), lambda b: (0, 0),
                         pipeline_mode=pl.Buffered(1)),
            pl.BlockSpec((1, C2p), lambda b: (0, 0),
                         pipeline_mode=pl.Buffered(1)),
            pl.BlockSpec(memory_space=pltpu.MemorySpace.SMEM),
        ],
        out_specs=pl.BlockSpec((1, 8, 128), lambda b: (b, 0, 0)),
        scratch_shapes=[pltpu.VMEM((P, 9 * Cp), jnp.bfloat16)],
        compiler_params=pltpu.CompilerParams(
            dimension_semantics=("parallel",),   # shard batch over 2 TCs (v7x)
            vmem_limit_bytes=32 * 1024 * 1024,   # within v7x's 32 MiB scoped VMEM;
                                                 # ample for UEIQI's 14x14x384 FAM maps
        ),
        cost_estimate=cost,
    )(xph, wf, wl, bl)

    return out[:, 0, :1]                                                  # [B, 1]


def qmm_reference(f, w_conv, w_lin, b_lin):
    """Pure-JAX f32 reference mirroring the PyTorch QMM forward."""
    y = jax.lax.conv_general_dilated(
        f, w_conv, window_strides=(2, 2), padding=((1, 1), (1, 1)),
        dimension_numbers=("NCHW", "OIHW", "NCHW"))
    y = jnp.maximum(y, 0.0)
    pooled = jnp.mean(y, axis=(2, 3))
    return pooled @ w_lin.T + b_lin


if __name__ == "__main__":
    key = jax.random.PRNGKey(0)
    kf, kw1, kw2, kb, kf2 = jax.random.split(key, 5)

    # Small shapes consistent with QMM: batch=2, in_channels=4, spatial=16.
    B, C, H, W = 2, 4, 16, 16

    # Stand-in for the FAM output feature map that UEIQI feeds into QMM.
    f = jax.random.normal(kf, (B, C, H, W), dtype=jnp.float32)

    # Deterministic synthetic parameters (QMM.__init__ shapes, dims=1).
    w_conv = 0.1 * jax.random.normal(kw1, (2 * C, C, 3, 3), dtype=jnp.float32)
    w_lin = 0.1 * jax.random.normal(kw2, (1, 2 * C), dtype=jnp.float32)
    b_lin = 0.1 * jax.random.normal(kb, (1,), dtype=jnp.float32)

    out = jax.block_until_ready(qmm_forward(f, w_conv, w_lin, b_lin))
    ref = qmm_reference(f, w_conv, w_lin, b_lin)
    assert out.shape == (B, 1), out.shape
    # bf16 MXU operands (f32 accumulation) -> loosened tolerance vs f32 reference.
    assert jnp.allclose(out, ref, atol=2e-2, rtol=2e-2), (out, ref)

    # Odd / non-multiple-of-8 spatial extents exercise the Wo sublane padding
    # and the global-average-pool mask path.
    H2, W2 = 15, 14
    f2 = jax.random.normal(kf2, (B, C, H2, W2), dtype=jnp.float32)
    out2 = jax.block_until_ready(qmm_forward(f2, w_conv, w_lin, b_lin))
    ref2 = qmm_reference(f2, w_conv, w_lin, b_lin)
    assert out2.shape == (B, 1), out2.shape
    assert jnp.allclose(out2, ref2, atol=2e-2, rtol=2e-2), (out2, ref2)

    print("KERNEL_OK")
</pallas_src>

<mosaic_0001>
module attributes {stable_mosaic.version = 11 : i64} {
  func.func @qmm_kernel(%arg0: i32, %arg1: memref<1x36x9x4xbf16, #tpu.memory_space<vmem>>, %arg2: memref<1152x128xbf16, #tpu.memory_space<vmem>>, %arg3: memref<1x128xf32, #tpu.memory_space<vmem>>, %arg4: memref<1xf32, #tpu.memory_space<smem>>, %arg5: memref<1x8x128xf32, #tpu.memory_space<vmem>>, %arg6: memref<64x1152xbf16, #tpu.memory_space<vmem>>) attributes {dimension_semantics = [#tpu.dimension_semantics<parallel>], iteration_bounds = array<i64: 2>, scalar_prefetch = 0 : i64, scratch_operands = 1 : i64, tpu.core_type = #tpu.core_type<tc>, window_params = [{transform_indices = @transform_0, window_bounds = array<i64: 1, 36, 9, 4>}, {pipeline_mode = #tpu.pipeline_mode<synchronous>, transform_indices = @transform_1, window_bounds = array<i64: 1152, 128>}, {pipeline_mode = #tpu.pipeline_mode<synchronous>, transform_indices = @transform_2, window_bounds = array<i64: 1, 128>}, {transform_indices = @transform_3, window_bounds = array<i64: 1>}, {transform_indices = @transform_4, window_bounds = array<i64: 1, 8, 128>}]} {
    %cst = arith.constant 0.000000e+00 : bf16
    %0 = vector.broadcast %cst : bf16 to vector<64x1152xbf16>
    %c0 = arith.constant 0 : index
    %c0_0 = arith.constant 0 : index
    %1 = vector.load %arg6[%c0, %c0_0] : memref<64x1152xbf16, #tpu.memory_space<vmem>>, vector<64x1152xbf16>
    tpu.vector_store %arg6[%c0, %c0_0], %0 {strides = array<i32>} : memref<64x1152xbf16, #tpu.memory_space<vmem>>, vector<64x1152xbf16>,
    %c0_1 = arith.constant 0 : index
    %c0_2 = arith.constant 0 : index
    %c0_3 = arith.constant 0 : index
    %c0_4 = arith.constant 0 : index
    %2 = vector.load %arg1[%c0_1, %c0_2, %c0_3, %c0_4] : memref<1x36x9x4xbf16, #tpu.memory_space<vmem>>, vector<1x8x8x4xbf16>
    %3 = vector.shape_cast %2 : vector<1x8x8x4xbf16> to vector<8x8x4xbf16>
    %4 = vector.shape_cast %3 : vector<8x8x4xbf16> to vector<64x4xbf16>
    %c0_5 = arith.constant 0 : index
    %c0_6 = arith.constant 0 : index
    %5 = vector.load %arg6[%c0_5, %c0_6] : memref<64x1152xbf16, #tpu.memory_space<vmem>>, vector<64x4xbf16>
    tpu.vector_store %arg6[%c0_5, %c0_6], %4 {strides = array<i32>} : memref<64x1152xbf16, #tpu.memory_space<vmem>>, vector<64x4xbf16>,
    %c0_7 = arith.constant 0 : index
    %c9 = arith.constant 9 : index
    %c0_8 = arith.constant 0 : index
    %c0_9 = arith.constant 0 : index
    %6 = vector.load %arg1[%c0_7, %c9, %c0_8, %c0_9] : memref<1x36x9x4xbf16, #tpu.memory_space<vmem>>, vector<1x8x8x4xbf16>
    %7 = vector.shape_cast %6 : vector<1x8x8x4xbf16> to vector<8x8x4xbf16>
    %8 = vector.shape_cast %7 : vector<8x8x4xbf16> to vector<64x4xbf16>
    %c0_10 = arith.constant 0 : index
    %c128 = arith.constant 128 : index
    %9 = vector.load %arg6[%c0_10, %c128] : memref<64x1152xbf16, #tpu.memory_space<vmem>>, vector<64x4xbf16>
    tpu.vector_store %arg6[%c0_10, %c128], %8 {strides = array<i32>} : memref<64x1152xbf16, #tpu.memory_space<vmem>>, vector<64x4xbf16>,
    %c0_11 = arith.constant 0 : index
    %c0_12 = arith.constant 0 : index
    %c1 = arith.constant 1 : index
    %c0_13 = arith.constant 0 : index
    %10 = vector.load %arg1[%c0_11, %c0_12, %c1, %c0_13] : memref<1x36x9x4xbf16, #tpu.memory_space<vmem>>, vector<1x8x8x4xbf16>
    %11 = vector.shape_cast %10 : vector<1x8x8x4xbf16> to vector<8x8x4xbf16>
    %12 = vector.shape_cast %11 : vector<8x8x4xbf16> to vector<64x4xbf16>
    %c0_14 = arith.constant 0 : index
    %c256 = arith.constant 256 : index
    %13 = vector.load %arg6[%c0_14, %c256] : memref<64x1152xbf16, #tpu.memory_space<vmem>>, vector<64x4xbf16>
    tpu.vector_store %arg6[%c0_14, %c256], %12 {strides = array<i32>} : memref<64x1152xbf16, #tpu.memory_space<vmem>>, vector<64x4xbf16>,
    %c0_15 = arith.constant 0 : index
    %c18 = arith.constant 18 : index
    %c0_16 = arith.constant 0 : index
    %c0_17 = arith.constant 0 : index
    %14 = vector.load %arg1[%c0_15, %c18, %c0_16, %c0_17] : memref<1x36x9x4xbf16, #tpu.memory_space<vmem>>, vector<1x8x8x4xbf16>
    %15 = vector.shape_cast %14 : vector<1x8x8x4xbf16> to vector<8x8x4xbf16>
    %16 = vector.shape_cast %15 : vector<8x8x4xbf16> to vector<64x4xbf16>
    %c0_18 = arith.constant 0 : index
    %c384 = arith.constant 384 : index
    %17 = vector.load %arg6[%c0_18, %c384] : memref<64x1152xbf16, #tpu.memory_space<vmem>>, vector<64x4xbf16>
    tpu.vector_store %arg6[%c0_18, %c384], %16 {strides = array<i32>} : memref<64x1152xbf16, #tpu.memory_space<vmem>>, vector<64x4xbf16>,
    %c0_19 = arith.constant 0 : index
    %c27 = arith.constant 27 : index
    %c0_20 = arith.constant 0 : index
    %c0_21 = arith.constant 0 : index
    %18 = vector.load %arg1[%c0_19, %c27, %c0_20, %c0_21] : memref<1x36x9x4xbf16, #tpu.memory_space<vmem>>, vector<1x8x8x4xbf16>
    %19 = vector.shape_cast %18 : vector<1x8x8x4xbf16> to vector<8x8x4xbf16>
    %20 = vector.shape_cast %19 : vector<8x8x4xbf16> to vector<64x4xbf16>
    %c0_22 = arith.constant 0 : index
    %c512 = arith.constant 512 : index
    %21 = vector.load %arg6[%c0_22, %c512] : memref<64x1152xbf16, #tpu.memory_space<vmem>>, vector<64x4xbf16>
    tpu.vector_store %arg6[%c0_22, %c512], %20 {strides = array<i32>} : memref<64x1152xbf16, #tpu.memory_space<vmem>>, vector<64x4xbf16>,
    %c0_23 = arith.constant 0 : index
    %c18_24 = arith.constant 18 : index
    %c1_25 = arith.constant 1 : index
    %c0_26 = arith.constant 0 : index
    %22 = vector.load %arg1[%c0_23, %c18_24, %c1_25, %c0_26] : memref<1x36x9x4xbf16, #tpu.memory_space<vmem>>, vector<1x8x8x4xbf16>
    %23 = vector.shape_cast %22 : vector<1x8x8x4xbf16> to vector<8x8x4xbf16>
    %24 = vector.shape_cast %23 : vector<8x8x4xbf16> to vector<64x4xbf16>
    %c0_27 = arith.constant 0 : index
    %c640 = arith.constant 640 : index
    %25 = vector.load %arg6[%c0_27, %c640] : memref<64x1152xbf16, #tpu.memory_space<vmem>>, vector<64x4xbf16>
    tpu.vector_store %arg6[%c0_27, %c640], %24 {strides = array<i32>} : memref<64x1152xbf16, #tpu.memory_space<vmem>>, vector<64x4xbf16>,
    %c0_28 = arith.constant 0 : index
    %c1_29 = arith.constant 1 : index
    %c0_30 = arith.constant 0 : index
    %c0_31 = arith.constant 0 : index
    %26 = vector.load %arg1[%c0_28, %c1_29, %c0_30, %c0_31] : memref<1x36x9x4xbf16, #tpu.memory_space<vmem>>, vector<1x8x8x4xbf16>
    %27 = vector.shape_cast %26 : vector<1x8x8x4xbf16> to vector<8x8x4xbf16>
    %28 = vector.shape_cast %27 : vector<8x8x4xbf16> to vector<64x4xbf16>
    %c0_32 = arith.constant 0 : index
    %c768 = arith.constant 768 : index
    %29 = vector.load %arg6[%c0_32, %c768] : memref<64x1152xbf16, #tpu.memory_space<vmem>>, vector<64x4xbf16>
    tpu.vector_store %arg6[%c0_32, %c768], %28 {strides = array<i32>} : memref<64x1152xbf16, #tpu.memory_space<vmem>>, vector<64x4xbf16>,
    %c0_33 = arith.constant 0 : index
    %c10 = arith.constant 10 : index
    %c0_34 = arith.constant 0 : index
    %c0_35 = arith.constant 0 : index
    %30 = vector.load %arg1[%c0_33, %c10, %c0_34, %c0_35] : memref<1x36x9x4xbf16, #tpu.memory_space<vmem>>, vector<1x8x8x4xbf16>
    %31 = vector.shape_cast %30 : vector<1x8x8x4xbf16> to vector<8x8x4xbf16>
    %32 = vector.shape_cast %31 : vector<8x8x4xbf16> to vector<64x4xbf16>
    %c0_36 = arith.constant 0 : index
    %c896 = arith.constant 896 : index
    %33 = vector.load %arg6[%c0_36, %c896] : memref<64x1152xbf16, #tpu.memory_space<vmem>>, vector<64x4xbf16>
    tpu.vector_store %arg6[%c0_36, %c896], %32 {strides = array<i32>} : memref<64x1152xbf16, #tpu.memory_space<vmem>>, vector<64x4xbf16>,
    %c0_37 = arith.constant 0 : index
    %c1_38 = arith.constant 1 : index
    %c1_39 = arith.constant 1 : index
    %c0_40 = arith.constant 0 : index
    %34 = vector.load %arg1[%c0_37, %c1_38, %c1_39, %c0_40] : memref<1x36x9x4xbf16, #tpu.memory_space<vmem>>, vector<1x8x8x4xbf16>
    %35 = vector.shape_cast %34 : vector<1x8x8x4xbf16> to vector<8x8x4xbf16>
    %36 = vector.shape_cast %35 : vector<8x8x4xbf16> to vector<64x4xbf16>
    %c0_41 = arith.constant 0 : index
    %c1024 = arith.constant 1024 : index
    %37 = vector.load %arg6[%c0_41, %c1024] : memref<64x1152xbf16, #tpu.memory_space<vmem>>, vector<64x4xbf16>
    tpu.vector_store %arg6[%c0_41, %c1024], %36 {strides = array<i32>} : memref<64x1152xbf16, #tpu.memory_space<vmem>>, vector<64x4xbf16>,
    %c0_42 = arith.constant 0 : index
    %c0_43 = arith.constant 0 : index
    %38 = vector.load %arg6[%c0_42, %c0_43] : memref<64x1152xbf16, #tpu.memory_space<vmem>>, vector<64x1152xbf16>
    %c0_44 = arith.constant 0 : index
    %c0_45 = arith.constant 0 : index
    %39 = vector.load %arg2[%c0_44, %c0_45] : memref<1152x128xbf16, #tpu.memory_space<vmem>>, vector<1152x128xbf16>
    %cst_46 = arith.constant dense<0.000000e+00> : vector<64x128xf32>
    %40 = tpu.matmul %38, %39, %cst_46 {dimension_numbers = #tpu.dot_dimension_numbers<[1], [0], [0], [1], [0, 0, 1, 1], [], []>} : vector<64x1152xbf16>, vector<1152x128xbf16>, vector<64x128xf32> -> vector<64x128xf32>
    %cst_47 = arith.constant 0.000000e+00 : f32
    %41 = vector.broadcast %cst_47 : f32 to vector<64x128xf32>
    %42 = arith.maximumf %40, %41 : vector<64x128xf32>
    %c0_48 = arith.constant 0 : index
    %c0_49 = arith.constant 0 : index
    %43 = vector.load %arg3[%c0_48, %c0_49] : memref<1x128xf32, #tpu.memory_space<vmem>>, vector<1x128xf32>
    %44 = vector.broadcast %43 : vector<1x128xf32> to vector<64x128xf32>
    %45 = arith.mulf %42, %44 : vector<64x128xf32>
    %cst_50 = arith.constant dense<0.000000e+00> : vector<128xf32>
    %46 = vector.multi_reduction <add>, %45, %cst_50 [0] : vector<64x128xf32> to vector<128xf32>
    %47 = vector.shape_cast %46 : vector<128xf32> to vector<1x128xf32>
    %cst_51 = arith.constant dense<0.000000e+00> : vector<1xf32>
    %48 = vector.multi_reduction <add>, %47, %cst_51 [1] : vector<1x128xf32> to vector<1xf32>
    %49 = vector.shape_cast %48 : vector<1xf32> to vector<1x1xf32>
    %cst_52 = arith.constant 1.562500e-02 : f32
    %50 = vector.broadcast %cst_52 : f32 to vector<1x1xf32>
    %51 = arith.mulf %49, %50 : vector<1x1xf32>
    %c0_53 = arith.constant 0 : index
    %52 = memref.load %arg4[%c0_53] : memref<1xf32, #tpu.memory_space<smem>>
    %53 = vector.broadcast %52 : f32 to vector<1x1xf32>
    %54 = arith.addf %51, %53 : vector<1x1xf32>
    %55 = vector.shape_cast %54 : vector<1x1xf32> to vector<1x1x1xf32>
    %56 = vector.shape_cast %55 : vector<1x1x1xf32> to vector<1x1x1xf32>
    %57 = vector.broadcast %56 : vector<1x1x1xf32> to vector<1x8x128xf32>
    %c0_54 = arith.constant 0 : index
    %c0_55 = arith.constant 0 : index
    %c0_56 = arith.constant 0 : index
    %58 = vector.load %arg5[%c0_54, %c0_55, %c0_56] : memref<1x8x128xf32, #tpu.memory_space<vmem>>, vector<1x8x128xf32>
    tpu.vector_store %arg5[%c0_54, %c0_55, %c0_56], %57 {strides = array<i32>} : memref<1x8x128xf32, #tpu.memory_space<vmem>>, vector<1x8x128xf32>,
    return
  }
  func.func @transform_0(%arg0: i32) -> (i32, i32, i32, i32) {
    %c0_i32 = arith.constant 0 : i32
    %c0_i32_0 = arith.constant 0 : i32
    %c0_i32_1 = arith.constant 0 : i32
    %c0_i32_2 = arith.constant 0 : i32
    return %arg0, %c0_i32, %c0_i32_0, %c0_i32_1 : i32, i32, i32, i32
  }
  func.func @transform_1(%arg0: i32) -> (i32, i32) {
    %c0_i32 = arith.constant 0 : i32
    %c0_i32_0 = arith.constant 0 : i32
    %c0_i32_1 = arith.constant 0 : i32
    return %c0_i32, %c0_i32_0 : i32, i32
  }
  func.func @transform_2(%arg0: i32) -> (i32, i32) {
    %c0_i32 = arith.constant 0 : i32
    %c0_i32_0 = arith.constant 0 : i32
    %c0_i32_1 = arith.constant 0 : i32
    return %c0_i32, %c0_i32_0 : i32, i32
  }
  func.func @transform_3(%arg0: i32) -> i32 {
    %c0_i32 = arith.constant 0 : i32
    %c0_i32_0 = arith.constant 0 : i32
    return %c0_i32 : i32
  }
  func.func @transform_4(%arg0: i32) -> (i32, i32, i32) {
    %c0_i32 = arith.constant 0 : i32
    %c0_i32_0 = arith.constant 0 : i32
    %c0_i32_1 = arith.constant 0 : i32
    return %arg0, %c0_i32, %c0_i32_0 : i32, i32, i32
  }
}

</mosaic_0001>

<llo_original>
// kernel: tpu_custom_call.1
$region0: #{tpu_custom_call.1}
  #allocation0 [shape = 'u32[]', space=smem, size = 0x4, offset = 0x4, fixed_abs, tag = 'smem constant byte address 0x4 - core index']
  #allocation1 [shape = 'u32[144,128]{1,0:T(1,128)}', space=vmem, size = 0x12000, scoped, tag = 'internal scratch']
  #allocation2 [shape = 'bf16[64,1152]{1,0:T(16,128)(2,1)}', space=vmem, size = 0x24000, scoped, tag = 'scratch operand']
  #allocation3 [shape = 'f32[1]{0:T(128)S(6)}', space=smem, size = 0x200, scoped, tag = 'scoped memory for tpu_custom_call.1']
  %s0 = inlined_call_operand.vmem [shape: bf16[2,36,9,4], index: 0, kind: input, shape index: {}]
  %s1 = inlined_call_operand.vmem [shape: bf16[1152,128], index: 1, kind: input, shape index: {}]
  %s2 = inlined_call_operand.vmem [shape: f32[1,128], index: 2, kind: input, shape index: {}]
  %s3 = inlined_call_operand.<no memory space> [shape: f32[1], index: 3, kind: input, shape index: {}]
  %s4 = inlined_call_operand.hbm [shape: f32[2,8,128], index: 4, kind: output, shape index: {}]
  %s5 = sld [smem:[#allocation0]]
  $region49: #{tpu_custom_call.1} parent=0
    _
  %s7 = ssub.s32 1, %s5
  %s8 = scalar_select 0, %s7, %s5
  %9 = sst [smem:[#allocation3]] %s3
  $region1: #{tpu_custom_call.1} parent=0
    #allocation4 [shape = 'u8[8192]{0}', space=vmem, size = 0x2000, scoped, tag = 'output window, operand 0']
    #allocation5 [shape = 's32[2]{0}', space=sflag, size = 0x8, scoped, tag = 'scoped memory for tpu_custom_call.1']
    %10 = vsyncpa [#allocation5], 0
    %s11 = scalar_lea.sflag [#allocation5], 1
    %12 = vsyncpa %s11, 0
    loop: start=0, step=1, limit=4
    $region2: #{tpu_custom_call.1} parent=1 // loop_pre_header
      _
    $region3: #{tpu_custom_call.1} parent=1 // loop_header
      %s14 = sphi 0, %s18
      %p15 = scmp.ge.s32.totalorder %s14, 4
      %s24 = sphi 0, %s26
      %s27 = sphi 0, %s24
      %s28 = sphi 0, %s27
      %s44 = sphi 0, %s28
      %s48 = sphi 0, %s48
      %s50 = sphi 0, %s48
      %s51 = sphi 0, %s50
      %s65 = sphi 0, %s51
      %s69 = sphi 0, %s69
      %s71 = sphi 0, %s69
      %s72 = sphi 0, %s71
      %s86 = sphi 0, %s72
      %s90 = sphi 0, %s90
      %s92 = sphi 0, %s90
      %s93 = sphi 0, %s92
      %s107 = sphi 0, %s93
      %s113 = sphi 0, %s115
      %s116 = sphi 0, %s113
      %s117 = sphi 0, %s116
      %s133 = sphi 0, %s117
    $region4: #{tpu_custom_call.1} parent=1 // loop_header_branch
      %17 = sbr.rel (%p15) target = $region8
    $region5: #{tpu_custom_call.1} parent=1 // loop_body
      %s19 = ssub.s32 %s14, 1
      %s20 = ssub.s32 %s14, 2
      %s21 = sadd.s32 %s14, 1
      %s22 = ssub.s32 %s14, %s21
      %p23 = scmp.eq.s32.totalorder %s22, 0
      %s25 = sadd.s32 %s24, 1
      %s26 = scalar_select %p23, %s24, %s25
      %p29 = pneg %p23
      %p30 = scmp.eq.s32.totalorder %s14, 1
      %p31 = por %p29, %p30
      %p32 = scmp.ne.s32.totalorder %s24, %s27
      %p33 = scmp.eq.s32.totalorder %s14, 0
      %p34 = por %p32, %p33
      %p35 = scmp.ne.s32.totalorder %s24, %s27
      %p36 = scmp.eq.s32.totalorder %s19, 1
      %p37 = por %p35, %p36
      %p38 = scmp.ne.s32.totalorder %s27, %s28
      %p39 = scmp.eq.s32.totalorder %s19, 0
      %p40 = por %p38, %p39
      %p41 = scmp.ne.s32.totalorder %s27, %s28
      %p42 = scmp.eq.s32.totalorder %s20, 1
      %p43 = por %p41, %p42
      %p45 = scmp.ne.s32.totalorder %s28, %s44
      %p46 = scmp.eq.s32.totalorder %s20, 0
      %p47 = por %p45, %p46
      %s49 = sadd.s32 %s48, 1
      %p52 = scmp.eq.s32.totalorder %s14, 1
      %p53 = scmp.ne.s32.totalorder %s48, %s50
      %p54 = scmp.eq.s32.totalorder %s14, 0
      %p55 = por %p53, %p54
      %p56 = scmp.ne.s32.totalorder %s48, %s50
      %p57 = scmp.eq.s32.totalorder %s19, 1
      %p58 = por %p56, %p57
      %p59 = scmp.ne.s32.totalorder %s50, %s51
      %p60 = scmp.eq.s32.totalorder %s19, 0
      %p61 = por %p59, %p60
      %p62 = scmp.ne.s32.totalorder %s50, %s51
      %p63 = scmp.eq.s32.totalorder %s20, 1
      %p64 = por %p62, %p63
      %p66 = scmp.ne.s32.totalorder %s51, %s65
      %p67 = scmp.eq.s32.totalorder %s20, 0
      %p68 = por %p66, %p67
      %s70 = sadd.s32 %s69, 1
      %p73 = scmp.eq.s32.totalorder %s14, 1
      %p74 = scmp.ne.s32.totalorder %s69, %s71
      %p75 = scmp.eq.s32.totalorder %s14, 0
      %p76 = por %p74, %p75
      %p77 = scmp.ne.s32.totalorder %s69, %s71
      %p78 = scmp.eq.s32.totalorder %s19, 1
      %p79 = por %p77, %p78
      %p80 = scmp.ne.s32.totalorder %s71, %s72
      %p81 = scmp.eq.s32.totalorder %s19, 0
      %p82 = por %p80, %p81
      %p83 = scmp.ne.s32.totalorder %s71, %s72
      %p84 = scmp.eq.s32.totalorder %s20, 1
      %p85 = por %p83, %p84
      %p87 = scmp.ne.s32.totalorder %s72, %s86
      %p88 = scmp.eq.s32.totalorder %s20, 0
      %p89 = por %p87, %p88
      %s91 = sadd.s32 %s90, 1
      %p94 = scmp.eq.s32.totalorder %s14, 1
      %p95 = scmp.ne.s32.totalorder %s90, %s92
      %p96 = scmp.eq.s32.totalorder %s14, 0
      %p97 = por %p95, %p96
      %p98 = scmp.ne.s32.totalorder %s90, %s92
      %p99 = scmp.eq.s32.totalorder %s19, 1
      %p100 = por %p98, %p99
      %p101 = scmp.ne.s32.totalorder %s92, %s93
      %p102 = scmp.eq.s32.totalorder %s19, 0
      %p103 = por %p101, %p102
      %p104 = scmp.ne.s32.totalorder %s92, %s93
      %p105 = scmp.eq.s32.totalorder %s20, 1
      %p106 = por %p104, %p105
      %p108 = scmp.ne.s32.totalorder %s93, %s107
      %p109 = scmp.eq.s32.totalorder %s20, 0
      %p110 = por %p108, %p109
      %s111 = ssub.s32 %s14, %s21
      %p112 = scmp.eq.s32.totalorder %s111, 0
      %s114 = sadd.s32 %s113, 1
      %s115 = scalar_select %p112, %s113, %s114
      %p118 = pneg %p112
      %p119 = scmp.eq.s32.totalorder %s14, 1
      %p120 = por %p118, %p119
      %p121 = scmp.ne.s32.totalorder %s113, %s116
      %p122 = scmp.eq.s32.totalorder %s14, 0
      %p123 = por %p121, %p122
      %p124 = scmp.ne.s32.totalorder %s113, %s116
      %p125 = scmp.eq.s32.totalorder %s19, 1
      %p126 = por %p124, %p125
      %p127 = scmp.ne.s32.totalorder %s116, %s117
      %p128 = scmp.eq.s32.totalorder %s19, 0
      %p129 = por %p127, %p128
      %p130 = scmp.ne.s32.totalorder %s116, %s117
      %p131 = scmp.eq.s32.totalorder %s20, 1
      %p132 = por %p130, %p131
      %p134 = scmp.ne.s32.totalorder %s117, %s133
      %p135 = scmp.eq.s32.totalorder %s20, 0
      %p136 = por %p134, %p135
      %p137 = scmp.le.s32.totalorder 1, %s14
      %p138 = scmp.lt.s32.totalorder %s14, 3
      %p139 = pnand %p137, %p138
      %p140 = pneg %p139
      // Predicated region
      $region9: #{tpu_custom_call.1} parent=5 // pred_check
        _
      $region10: #{tpu_custom_call.1} parent=5 // pred_check_branch
        %142 = sbr.rel (%p139) target = $region12
      $region11: #{tpu_custom_call.1} parent=5 // pred_region
        %s143 = ssub.s32 %s14, 1
        // Predicated region
        $region13: #{tpu_custom_call.1} parent=11 // pred_check
          %p144 = pneg %p61
        $region14: #{tpu_custom_call.1} parent=11 // pred_check_branch
          %146 = sbr.rel (%p144) target = $region16
        $region15: #{tpu_custom_call.1} parent=11 // pred_region
          _
        $region16: #{tpu_custom_call.1} parent=11 // pred_fallthru
          _
        // Predicated region
        $region17: #{tpu_custom_call.1} parent=11 // pred_check
          %p147 = pneg %p82
        $region18: #{tpu_custom_call.1} parent=11 // pred_check_branch
          %149 = sbr.rel (%p147) target = $region20
        $region19: #{tpu_custom_call.1} parent=11 // pred_region
          _
        $region20: #{tpu_custom_call.1} parent=11 // pred_fallthru
          _
        // Predicated region
        $region21: #{tpu_custom_call.1} parent=11 // pred_check
          %p150 = pneg %p103
        $region22: #{tpu_custom_call.1} parent=11 // pred_check_branch
          %152 = sbr.rel (%p150) target = $region24
        $region23: #{tpu_custom_call.1} parent=11 // pred_region
          _
        $region24: #{tpu_custom_call.1} parent=11 // pred_fallthru
          _
      $region12: #{tpu_custom_call.1} parent=5 // pred_fallthru
        _
      %p153 = scmp.lt.s32.totalorder %s14, 2
      // Predicated region
      $region25: #{tpu_custom_call.1} parent=5 // pred_check
        %p154 = pneg %p153
      $region26: #{tpu_custom_call.1} parent=5 // pred_check_branch
        %156 = sbr.rel (%p154) target = $region28
      $region27: #{tpu_custom_call.1} parent=5 // pred_region
        // Predicated region
        $region29: #{tpu_custom_call.1} parent=27 // pred_check
          %p157 = pneg %p34
        $region30: #{tpu_custom_call.1} parent=27 // pred_check_branch
          %159 = sbr.rel (%p157) target = $region32
        $region31: #{tpu_custom_call.1} parent=27 // pred_region
          %p160 = scmp.lt.s32.totalorder %s14, 1
          %s161 = scalar_select %p160, %s14, 1
          %s162 = smul.addr %s161, 72
          %s163 = smul.addr %s162, 4
          %s164 = scalar_lea.vmem %s0, %s163
        $region32: #{tpu_custom_call.1} parent=27 // pred_fallthru
          _
      $region28: #{tpu_custom_call.1} parent=5 // pred_fallthru
        _
      %p165 = scmp.le.s32.totalorder 1, %s14
      %p166 = scmp.lt.s32.totalorder %s14, 3
      %p167 = pnand %p165, %p166
      %p168 = pneg %p167
      // Predicated region
      $region33: #{tpu_custom_call.1} parent=5 // pred_check
        _
      $region34: #{tpu_custom_call.1} parent=5 // pred_check_branch
        %170 = sbr.rel (%p167) target = $region36
      $region35: #{tpu_custom_call.1} parent=5 // pred_region
        %s171 = ssub.s32 %s14, 1
        %p172 = scmp.lt.s32.totalorder %s19, 1
        %s173 = scalar_select %p172, %s19, 1
        %s174 = smul.addr %s173, 72
        %s175 = smul.addr %s174, 4
        %s176 = scalar_lea.vmem %s0, %s175
        %p177 = pneg %p40
        %p178 = pneg %p37
        %p179 = pneg %p61
        %p180 = pneg %p58
        %p181 = pneg %p82
        %p182 = pneg %p79
        %p183 = pneg %p103
        %p184 = pneg %p100
        %p185 = pneg %p129
        %p186 = pneg %p126
        %s187 = sand.u32 %s116, 1
        %s188 = scalar_lea.sflag [#allocation5], %s187
        %s189 = sand.u32 %s116, 1
        %s190 = smul.addr %s189, 8
        %s191 = scalar_lea.vmem [#allocation4], %s190
        %p192 = scmp.lt.s32.totalorder %s19, 1
        %s193 = scalar_select %p192, %s19, 1
        %s194 = smul.addr %s193, 72
        %s195 = smul.addr %s194, 4
        %s196 = scalar_lea.vmem %s0, %s195
        %198 = vst [vmem:[#allocation2] sm:$0xff] 0
        %199 = vst [vmem:[#allocation2 + $0x8] sm:$0xff] 0
        %200 = vst [vmem:[#allocation2 + $0x10] sm:$0xff] 0
        %201 = vst [vmem:[#allocation2 + $0x18] sm:$0xff] 0
        %202 = vst [vmem:[#allocation2 + $0x20] sm:$0xff] 0
        %203 = vst [vmem:[#allocation2 + $0x28] sm:$0xff] 0
        %204 = vst [vmem:[#allocation2 + $0x30] sm:$0xff] 0
        %205 = vst [vmem:[#allocation2 + $0x38] sm:$0xff] 0
        %206 = vst [vmem:[#allocation2 + $0x40] sm:$0xff] 0
        %207 = vst [vmem:[#allocation2 + $0x48] sm:$0xff] 0
        %208 = vst [vmem:[#allocation2 + $0x50] sm:$0xff] 0
        %209 = vst [vmem:[#allocation2 + $0x58] sm:$0xff] 0
        %210 = vst [vmem:[#allocation2 + $0x60] sm:$0xff] 0
        %211 = vst [vmem:[#allocation2 + $0x68] sm:$0xff] 0
        %212 = vst [vmem:[#allocation2 + $0x70] sm:$0xff] 0
        %213 = vst [vmem:[#allocation2 + $0x78] sm:$0xff] 0
        %214 = vst [vmem:[#allocation2 + $0x80] sm:$0xff] 0
        %215 = vst [vmem:[#allocation2 + $0x88] sm:$0xff] 0
        %216 = vst [vmem:[#allocation2 + $0x90] sm:$0xff] 0
        %217 = vst [vmem:[#allocation2 + $0x98] sm:$0xff] 0
        %218 = vst [vmem:[#allocation2 + $0xa0] sm:$0xff] 0
        %219 = vst [vmem:[#allocation2 + $0xa8] sm:$0xff] 0
        %220 = vst [vmem:[#allocation2 + $0xb0] sm:$0xff] 0
        %221 = vst [vmem:[#allocation2 + $0xb8] sm:$0xff] 0
        %222 = vst [vmem:[#allocation2 + $0xc0] sm:$0xff] 0
        %223 = vst [vmem:[#allocation2 + $0xc8] sm:$0xff] 0
        %224 = vst [vmem:[#allocation2 + $0xd0] sm:$0xff] 0
        %225 = vst [vmem:[#allocation2 + $0xd8] sm:$0xff] 0
        %226 = vst [vmem:[#allocation2 + $0xe0] sm:$0xff] 0
        %227 = vst [vmem:[#allocation2 + $0xe8] sm:$0xff] 0
        %228 = vst [vmem:[#allocation2 + $0xf0] sm:$0xff] 0
        %229 = vst [vmem:[#allocation2 + $0xf8] sm:$0xff] 0
        %230 = vst [vmem:[#allocation2 + $0x100] sm:$0xff] 0
        %231 = vst [vmem:[#allocation2 + $0x108] sm:$0xff] 0
        %232 = vst [vmem:[#allocation2 + $0x110] sm:$0xff] 0
        %233 = vst [vmem:[#allocation2 + $0x118] sm:$0xff] 0
        %v234 = vld [vmem:[%s196] sm:$0xf]
        %v235 = vld [vmem:[%s196 + $0x8] sm:$0xf]
        %v236 = vld [vmem:[%s196 + $0x10] sm:$0xf]
        %v237 = vld [vmem:[%s196 + $0x18] sm:$0xf]
        %v238 = vld [vmem:[%s196 + $0x20] sm:$0xf]
        %v239 = vld [vmem:[%s196 + $0x28] sm:$0xf]
        %v240 = vld [vmem:[%s196 + $0x30] sm:$0xf]
        %v241 = vld [vmem:[%s196 + $0x38] sm:$0xf]
        %v250 = vunpack.c.l.b16 %v234
        %v251 = vunpack.c.l.b16 %v235
        %v252 = vunpack.c.l.b16 %v236
        %v253 = vunpack.c.l.b16 %v237
        %v254 = vunpack.c.l.b16 %v238
        %v255 = vunpack.c.l.b16 %v239
        %v256 = vunpack.c.l.b16 %v240
        %v257 = vunpack.c.l.b16 %v241
        %v258 = vpack.c.b16 %v251, %v250
        %v259 = vpack.c.b16 %v253, %v252
        %v260 = vpack.c.b16 %v255, %v254
        %v261 = vpack.c.b16 %v257, %v256
        %vm266 = vcmask 31744
        %267 = vst.msk [vmem:[#allocation2] sm:$0xff] %vm266, %v258
        %268 = vst.msk [vmem:[#allocation2 + $0x48] sm:$0xff] %vm266, %v259
        %269 = vst.msk [vmem:[#allocation2 + $0x90] sm:$0xff] %vm266, %v260
        %270 = vst.msk [vmem:[#allocation2 + $0xd8] sm:$0xff] %vm266, %v261
        %s271 = scalar_lea.vmem %s196, 72
        %v272 = vld [vmem:[%s271] sm:$0xf]
        %v273 = vld [vmem:[%s271 + $0x8] sm:$0xf]
        %v274 = vld [vmem:[%s271 + $0x10] sm:$0xf]
        %v275 = vld [vmem:[%s271 + $0x18] sm:$0xf]
        %v276 = vld [vmem:[%s271 + $0x20] sm:$0xf]
        %v277 = vld [vmem:[%s271 + $0x28] sm:$0xf]
        %v278 = vld [vmem:[%s271 + $0x30] sm:$0xf]
        %v279 = vld [vmem:[%s271 + $0x38] sm:$0xf]
        %v288 = vunpack.c.l.b16 %v272
        %v289 = vunpack.c.l.b16 %v273
        %v290 = vunpack.c.l.b16 %v274
        %v291 = vunpack.c.l.b16 %v275
        %v292 = vunpack.c.l.b16 %v276
        %v293 = vunpack.c.l.b16 %v277
        %v294 = vunpack.c.l.b16 %v278
        %v295 = vunpack.c.l.b16 %v279
        %v296 = vpack.c.b16 %v289, %v288
        %v297 = vpack.c.b16 %v291, %v290
        %v298 = vpack.c.b16 %v293, %v292
        %v299 = vpack.c.b16 %v295, %v294
        %304 = vst.msk [vmem:[#allocation2 + $0x8] sm:$0xff] %vm266, %v296
        %305 = vst.msk [vmem:[#allocation2 + $0x50] sm:$0xff] %vm266, %v297
        %306 = vst.msk [vmem:[#allocation2 + $0x98] sm:$0xff] %vm266, %v298
        %307 = vst.msk [vmem:[#allocation2 + $0xe0] sm:$0xff] %vm266, %v299
        %v308 = vld [vmem:[%s196] sm:$0xf]
        %v309 = vld [vmem:[%s196 + $0x4] sm:$0x1]
        %v310 = vld [vmem:[%s196 + $0x8] sm:$0xf]
        %v311 = vld [vmem:[%s196 + $0xc] sm:$0x1]
        %v312 = vld [vmem:[%s196 + $0x10] sm:$0xf]
        %v313 = vld [vmem:[%s196 + $0x14] sm:$0x1]
        %v314 = vld [vmem:[%s196 + $0x18] sm:$0xf]
        %v315 = vld [vmem:[%s196 + $0x1c] sm:$0x1]
        %v316 = vld [vmem:[%s196 + $0x20] sm:$0xf]
        %v317 = vld [vmem:[%s196 + $0x24] sm:$0x1]
        %v318 = vld [vmem:[%s196 + $0x28] sm:$0xf]
        %v319 = vld [vmem:[%s196 + $0x2c] sm:$0x1]
        %v320 = vld [vmem:[%s196 + $0x30] sm:$0xf]
        %v321 = vld [vmem:[%s196 + $0x34] sm:$0x1]
        %v322 = vld [vmem:[%s196 + $0x38] sm:$0xf]
        %v323 = vld [vmem:[%s196 + $0x3c] sm:$0x1]
        %vm324 = vsmask.f32 3328
        %vm325 = vsmask.f32 7440
        %vm326 = vmor %vm324, %vm325
        %v328 = vshrl.u32 %v308, 16
        %v330 = vrot.slane %v328, 4
        %v331 = vshll.u32 %v308, 16
        %v333 = vrot.slane %v331, 5
        %v334 = vor.u32 %v330, %v333
        %v335 = vrot.slane %v334, 4
        %v337 = vshll.u32 %v309, 16
        %v339 = vrot.slane %v337, 5
        %v340 = vsel %vm326, %v335, %v339
        %v342 = vshrl.u32 %v310, 16
        %v344 = vrot.slane %v342, 4
        %v345 = vshll.u32 %v310, 16
        %v347 = vrot.slane %v345, 5
        %v348 = vor.u32 %v344, %v347
        %v349 = vrot.slane %v348, 4
        %v351 = vshll.u32 %v311, 16
        %v353 = vrot.slane %v351, 5
        %v354 = vsel %vm326, %v349, %v353
        %v356 = vshrl.u32 %v312, 16
        %v358 = vrot.slane %v356, 4
        %v359 = vshll.u32 %v312, 16
        %v361 = vrot.slane %v359, 5
        %v362 = vor.u32 %v358, %v361
        %v363 = vrot.slane %v362, 4
        %v365 = vshll.u32 %v313, 16
        %v367 = vrot.slane %v365, 5
        %v368 = vsel %vm326, %v363, %v367
        %v370 = vshrl.u32 %v314, 16
        %v372 = vrot.slane %v370, 4
        %v373 = vshll.u32 %v314, 16
        %v375 = vrot.slane %v373, 5
        %v376 = vor.u32 %v372, %v375
        %v377 = vrot.slane %v376, 4
        %v379 = vshll.u32 %v315, 16
        %v381 = vrot.slane %v379, 5
        %v382 = vsel %vm326, %v377, %v381
        %v384 = vshrl.u32 %v316, 16
        %v386 = vrot.slane %v384, 4
        %v387 = vshll.u32 %v316, 16
        %v389 = vrot.slane %v387, 5
        %v390 = vor.u32 %v386, %v389
        %v391 = vrot.slane %v390, 4
        %v393 = vshll.u32 %v317, 16
        %v395 = vrot.slane %v393, 5
        %v396 = vsel %vm326, %v391, %v395
        %v398 = vshrl.u32 %v318, 16
        %v400 = vrot.slane %v398, 4
        %v401 = vshll.u32 %v318, 16
        %v403 = vrot.slane %v401, 5
        %v404 = vor.u32 %v400, %v403
        %v405 = vrot.slane %v404, 4
        %v407 = vshll.u32 %v319, 16
        %v409 = vrot.slane %v407, 5
        %v410 = vsel %vm326, %v405, %v409
        %v412 = vshrl.u32 %v320, 16
        %v414 = vrot.slane %v412, 4
        %v415 = vshll.u32 %v320, 16
        %v417 = vrot.slane %v415, 5
        %v418 = vor.u32 %v414, %v417
        %v419 = vrot.slane %v418, 4
        %v421 = vshll.u32 %v321, 16
        %v423 = vrot.slane %v421, 5
        %v424 = vsel %vm326, %v419, %v423
        %v426 = vshrl.u32 %v322, 16
        %v428 = vrot.slane %v426, 4
        %v429 = vshll.u32 %v322, 16
        %v431 = vrot.slane %v429, 5
        %v432 = vor.u32 %v428, %v431
        %v433 = vrot.slane %v432, 4
        %v435 = vshll.u32 %v323, 16
        %v437 = vrot.slane %v435, 5
        %v438 = vsel %vm326, %v433, %v437
        %v439 = vunpack.c.l.b16 %v340
        %v440 = vunpack.c.l.b16 %v354
        %v441 = vunpack.c.l.b16 %v368
        %v442 = vunpack.c.l.b16 %v382
        %v443 = vunpack.c.l.b16 %v396
        %v444 = vunpack.c.l.b16 %v410
        %v445 = vunpack.c.l.b16 %v424
        %v446 = vunpack.c.l.b16 %v438
        %v447 = vpack.c.b16 %v440, %v439
        %v448 = vpack.c.b16 %v442, %v441
        %v449 = vpack.c.b16 %v444, %v443
        %v450 = vpack.c.b16 %v446, %v445
        %455 = vst.msk [vmem:[#allocation2 + $0x10] sm:$0xff] %vm266, %v447
        %456 = vst.msk [vmem:[#allocation2 + $0x58] sm:$0xff] %vm266, %v448
        %457 = vst.msk [vmem:[#allocation2 + $0xa0] sm:$0xff] %vm266, %v449
        %458 = vst.msk [vmem:[#allocation2 + $0xe8] sm:$0xff] %vm266, %v450
        %s459 = scalar_lea.vmem %s196, 144
        %v460 = vld [vmem:[%s459] sm:$0xf]
        %v461 = vld [vmem:[%s459 + $0x8] sm:$0xf]
        %v462 = vld [vmem:[%s459 + $0x10] sm:$0xf]
        %v463 = vld [vmem:[%s459 + $0x18] sm:$0xf]
        %v464 = vld [vmem:[%s459 + $0x20] sm:$0xf]
        %v465 = vld [vmem:[%s459 + $0x28] sm:$0xf]
        %v466 = vld [vmem:[%s459 + $0x30] sm:$0xf]
        %v467 = vld [vmem:[%s459 + $0x38] sm:$0xf]
        %v476 = vunpack.c.l.b16 %v460
        %v477 = vunpack.c.l.b16 %v461
        %v478 = vunpack.c.l.b16 %v462
        %v479 = vunpack.c.l.b16 %v463
        %v480 = vunpack.c.l.b16 %v464
        %v481 = vunpack.c.l.b16 %v465
        %v482 = vunpack.c.l.b16 %v466
        %v483 = vunpack.c.l.b16 %v467
        %v484 = vpack.c.b16 %v477, %v476
        %v485 = vpack.c.b16 %v479, %v478
        %v486 = vpack.c.b16 %v481, %v480
        %v487 = vpack.c.b16 %v483, %v482
        %492 = vst.msk [vmem:[#allocation2 + $0x18] sm:$0xff] %vm266, %v484
        %493 = vst.msk [vmem:[#allocation2 + $0x60] sm:$0xff] %vm266, %v485
        %494 = vst.msk [vmem:[#allocation2 + $0xa8] sm:$0xff] %vm266, %v486
        %495 = vst.msk [vmem:[#allocation2 + $0xf0] sm:$0xff] %vm266, %v487
        %s496 = scalar_lea.vmem %s196, 216
        %v497 = vld [vmem:[%s496] sm:$0xf]
        %v498 = vld [vmem:[%s496 + $0x8] sm:$0xf]
        %v499 = vld [vmem:[%s496 + $0x10] sm:$0xf]
        %v500 = vld [vmem:[%s496 + $0x18] sm:$0xf]
        %v501 = vld [vmem:[%s496 + $0x20] sm:$0xf]
        %v502 = vld [vmem:[%s496 + $0x28] sm:$0xf]
        %v503 = vld [vmem:[%s496 + $0x30] sm:$0xf]
        %v504 = vld [vmem:[%s496 + $0x38] sm:$0xf]
        %v513 = vunpack.c.l.b16 %v497
        %v514 = vunpack.c.l.b16 %v498
        %v515 = vunpack.c.l.b16 %v499
        %v516 = vunpack.c.l.b16 %v500
        %v517 = vunpack.c.l.b16 %v501
        %v518 = vunpack.c.l.b16 %v502
        %v519 = vunpack.c.l.b16 %v503
        %v520 = vunpack.c.l.b16 %v504
        %v521 = vpack.c.b16 %v514, %v513
        %v522 = vpack.c.b16 %v516, %v515
        %v523 = vpack.c.b16 %v518, %v517
        %v524 = vpack.c.b16 %v520, %v519
        %529 = vst.msk [vmem:[#allocation2 + $0x20] sm:$0xff] %vm266, %v521
        %530 = vst.msk [vmem:[#allocation2 + $0x68] sm:$0xff] %vm266, %v522
        %531 = vst.msk [vmem:[#allocation2 + $0xb0] sm:$0xff] %vm266, %v523
        %532 = vst.msk [vmem:[#allocation2 + $0xf8] sm:$0xff] %vm266, %v524
        %v533 = vld [vmem:[%s459] sm:$0xf]
        %v534 = vld [vmem:[%s459 + $0x4] sm:$0x1]
        %v535 = vld [vmem:[%s459 + $0x8] sm:$0xf]
        %v536 = vld [vmem:[%s459 + $0xc] sm:$0x1]
        %v537 = vld [vmem:[%s459 + $0x10] sm:$0xf]
        %v538 = vld [vmem:[%s459 + $0x14] sm:$0x1]
        %v539 = vld [vmem:[%s459 + $0x18] sm:$0xf]
        %v540 = vld [vmem:[%s459 + $0x1c] sm:$0x1]
        %v541 = vld [vmem:[%s459 + $0x20] sm:$0xf]
        %v542 = vld [vmem:[%s459 + $0x24] sm:$0x1]
        %v543 = vld [vmem:[%s459 + $0x28] sm:$0xf]
        %v544 = vld [vmem:[%s459 + $0x2c] sm:$0x1]
        %v545 = vld [vmem:[%s459 + $0x30] sm:$0xf]
        %v546 = vld [vmem:[%s459 + $0x34] sm:$0x1]
        %v547 = vld [vmem:[%s459 + $0x38] sm:$0xf]
        %v548 = vld [vmem:[%s459 + $0x3c] sm:$0x1]
        %v550 = vshrl.u32 %v533, 16
        %v552 = vrot.slane %v550, 4
        %v553 = vshll.u32 %v533, 16
        %v555 = vrot.slane %v553, 5
        %v556 = vor.u32 %v552, %v555
        %v557 = vrot.slane %v556, 4
        %v559 = vshll.u32 %v534, 16
        %v561 = vrot.slane %v559, 5
        %v562 = vsel %vm326, %v557, %v561
        %v564 = vshrl.u32 %v535, 16
        %v566 = vrot.slane %v564, 4
        %v567 = vshll.u32 %v535, 16
        %v569 = vrot.slane %v567, 5
        %v570 = vor.u32 %v566, %v569
        %v571 = vrot.slane %v570, 4
        %v573 = vshll.u32 %v536, 16
        %v575 = vrot.slane %v573, 5
        %v576 = vsel %vm326, %v571, %v575
        %v578 = vshrl.u32 %v537, 16
        %v580 = vrot.slane %v578, 4
        %v581 = vshll.u32 %v537, 16
        %v583 = vrot.slane %v581, 5
        %v584 = vor.u32 %v580, %v583
        %v585 = vrot.slane %v584, 4
        %v587 = vshll.u32 %v538, 16
        %v589 = vrot.slane %v587, 5
        %v590 = vsel %vm326, %v585, %v589
        %v592 = vshrl.u32 %v539, 16
        %v594 = vrot.slane %v592, 4
        %v595 = vshll.u32 %v539, 16
        %v597 = vrot.slane %v595, 5
        %v598 = vor.u32 %v594, %v597
        %v599 = vrot.slane %v598, 4
        %v601 = vshll.u32 %v540, 16
        %v603 = vrot.slane %v601, 5
        %v604 = vsel %vm326, %v599, %v603
        %v606 = vshrl.u32 %v541, 16
        %v608 = vrot.slane %v606, 4
        %v609 = vshll.u32 %v541, 16
        %v611 = vrot.slane %v609, 5
        %v612 = vor.u32 %v608, %v611
        %v613 = vrot.slane %v612, 4
        %v615 = vshll.u32 %v542, 16
        %v617 = vrot.slane %v615, 5
        %v618 = vsel %vm326, %v613, %v617
        %v620 = vshrl.u32 %v543, 16
        %v622 = vrot.slane %v620, 4
        %v623 = vshll.u32 %v543, 16
        %v625 = vrot.slane %v623, 5
        %v626 = vor.u32 %v622, %v625
        %v627 = vrot.slane %v626, 4
        %v629 = vshll.u32 %v544, 16
        %v631 = vrot.slane %v629, 5
        %v632 = vsel %vm326, %v627, %v631
        %v634 = vshrl.u32 %v545, 16
        %v636 = vrot.slane %v634, 4
        %v637 = vshll.u32 %v545, 16
        %v639 = vrot.slane %v637, 5
        %v640 = vor.u32 %v636, %v639
        %v641 = vrot.slane %v640, 4
        %v643 = vshll.u32 %v546, 16
        %v645 = vrot.slane %v643, 5
        %v646 = vsel %vm326, %v641, %v645
        %v648 = vshrl.u32 %v547, 16
        %v650 = vrot.slane %v648, 4
        %v651 = vshll.u32 %v547, 16
        %v653 = vrot.slane %v651, 5
        %v654 = vor.u32 %v650, %v653
        %v655 = vrot.slane %v654, 4
        %v657 = vshll.u32 %v548, 16
        %v659 = vrot.slane %v657, 5
        %v660 = vsel %vm326, %v655, %v659
        %v661 = vunpack.c.l.b16 %v562
        %v662 = vunpack.c.l.b16 %v576
        %v663 = vunpack.c.l.b16 %v590
        %v664 = vunpack.c.l.b16 %v604
        %v665 = vunpack.c.l.b16 %v618
        %v666 = vunpack.c.l.b16 %v632
        %v667 = vunpack.c.l.b16 %v646
        %v668 = vunpack.c.l.b16 %v660
        %v669 = vpack.c.b16 %v662, %v661
        %v670 = vpack.c.b16 %v664, %v663
        %v671 = vpack.c.b16 %v666, %v665
        %v672 = vpack.c.b16 %v668, %v667
        %677 = vst.msk [vmem:[#allocation2 + $0x28] sm:$0xff] %vm266, %v669
        %678 = vst.msk [vmem:[#allocation2 + $0x70] sm:$0xff] %vm266, %v670
        %679 = vst.msk [vmem:[#allocation2 + $0xb8] sm:$0xff] %vm266, %v671
        %680 = vst.msk [vmem:[#allocation2 + $0x100] sm:$0xff] %vm266, %v672
        %s681 = scalar_lea.vmem %s196, 8
        %v682 = vld [vmem:[%s681] sm:$0xf]
        %v683 = vld [vmem:[%s681 + $0x8] sm:$0xf]
        %v684 = vld [vmem:[%s681 + $0x10] sm:$0xf]
        %v685 = vld [vmem:[%s681 + $0x18] sm:$0xf]
        %v686 = vld [vmem:[%s681 + $0x20] sm:$0xf]
        %v687 = vld [vmem:[%s681 + $0x28] sm:$0xf]
        %v688 = vld [vmem:[%s681 + $0x30] sm:$0xf]
        %v689 = vld [vmem:[%s681 + $0x38] sm:$0xf]
        %v698 = vunpack.c.l.b16 %v682
        %v699 = vunpack.c.l.b16 %v683
        %v700 = vunpack.c.l.b16 %v684
        %v701 = vunpack.c.l.b16 %v685
        %v702 = vunpack.c.l.b16 %v686
        %v703 = vunpack.c.l.b16 %v687
        %v704 = vunpack.c.l.b16 %v688
        %v705 = vunpack.c.l.b16 %v689
        %v706 = vpack.c.b16 %v699, %v698
        %v707 = vpack.c.b16 %v701, %v700
        %v708 = vpack.c.b16 %v703, %v702
        %v709 = vpack.c.b16 %v705, %v704
        %714 = vst.msk [vmem:[#allocation2 + $0x30] sm:$0xff] %vm266, %v706
        %715 = vst.msk [vmem:[#allocation2 + $0x78] sm:$0xff] %vm266, %v707
        %716 = vst.msk [vmem:[#allocation2 + $0xc0] sm:$0xff] %vm266, %v708
        %717 = vst.msk [vmem:[#allocation2 + $0x108] sm:$0xff] %vm266, %v709
        %s718 = scalar_lea.vmem %s196, 80
        %v719 = vld [vmem:[%s718] sm:$0xf]
        %v720 = vld [vmem:[%s718 + $0x8] sm:$0xf]
        %v721 = vld [vmem:[%s718 + $0x10] sm:$0xf]
        %v722 = vld [vmem:[%s718 + $0x18] sm:$0xf]
        %v723 = vld [vmem:[%s718 + $0x20] sm:$0xf]
        %v724 = vld [vmem:[%s718 + $0x28] sm:$0xf]
        %v725 = vld [vmem:[%s718 + $0x30] sm:$0xf]
        %v726 = vld [vmem:[%s718 + $0x38] sm:$0xf]
        %v735 = vunpack.c.l.b16 %v719
        %v736 = vunpack.c.l.b16 %v720
        %v737 = vunpack.c.l.b16 %v721
        %v738 = vunpack.c.l.b16 %v722
        %v739 = vunpack.c.l.b16 %v723
        %v740 = vunpack.c.l.b16 %v724
        %v741 = vunpack.c.l.b16 %v725
        %v742 = vunpack.c.l.b16 %v726
        %v743 = vpack.c.b16 %v736, %v735
        %v744 = vpack.c.b16 %v738, %v737
        %v745 = vpack.c.b16 %v740, %v739
        %v746 = vpack.c.b16 %v742, %v741
        %751 = vst.msk [vmem:[#allocation2 + $0x38] sm:$0xff] %vm266, %v743
        %752 = vst.msk [vmem:[#allocation2 + $0x80] sm:$0xff] %vm266, %v744
        %753 = vst.msk [vmem:[#allocation2 + $0xc8] sm:$0xff] %vm266, %v745
        %754 = vst.msk [vmem:[#allocation2 + $0x110] sm:$0xff] %vm266, %v746
        %v755 = vld [vmem:[%s681] sm:$0xf]
        %v756 = vld [vmem:[%s681 + $0x4] sm:$0x1]
        %v757 = vld [vmem:[%s681 + $0x8] sm:$0xf]
        %v758 = vld [vmem:[%s681 + $0xc] sm:$0x1]
        %v759 = vld [vmem:[%s681 + $0x10] sm:$0xf]
        %v760 = vld [vmem:[%s681 + $0x14] sm:$0x1]
        %v761 = vld [vmem:[%s681 + $0x18] sm:$0xf]
        %v762 = vld [vmem:[%s681 + $0x1c] sm:$0x1]
        %v763 = vld [vmem:[%s681 + $0x20] sm:$0xf]
        %v764 = vld [vmem:[%s681 + $0x24] sm:$0x1]
        %v765 = vld [vmem:[%s681 + $0x28] sm:$0xf]
        %v766 = vld [vmem:[%s681 + $0x2c] sm:$0x1]
        %v767 = vld [vmem:[%s681 + $0x30] sm:$0xf]
        %v768 = vld [vmem:[%s681 + $0x34] sm:$0x1]
        %v769 = vld [vmem:[%s681 + $0x38] sm:$0xf]
        %v770 = vld [vmem:[%s681 + $0x3c] sm:$0x1]
        %v772 = vshrl.u32 %v755, 16
        %v774 = vrot.slane %v772, 4
        %v775 = vshll.u32 %v755, 16
        %v777 = vrot.slane %v775, 5
        %v778 = vor.u32 %v774, %v777
        %v779 = vrot.slane %v778, 4
        %v781 = vshll.u32 %v756, 16
        %v783 = vrot.slane %v781, 5
        %v784 = vsel %vm326, %v779, %v783
        %v786 = vshrl.u32 %v757, 16
        %v788 = vrot.slane %v786, 4
        %v789 = vshll.u32 %v757, 16
        %v791 = vrot.slane %v789, 5
        %v792 = vor.u32 %v788, %v791
        %v793 = vrot.slane %v792, 4
        %v795 = vshll.u32 %v758, 16
        %v797 = vrot.slane %v795, 5
        %v798 = vsel %vm326, %v793, %v797
        %v800 = vshrl.u32 %v759, 16
        %v802 = vrot.slane %v800, 4
        %v803 = vshll.u32 %v759, 16
        %v805 = vrot.slane %v803, 5
        %v806 = vor.u32 %v802, %v805
        %v807 = vrot.slane %v806, 4
        %v809 = vshll.u32 %v760, 16
        %v811 = vrot.slane %v809, 5
        %v812 = vsel %vm326, %v807, %v811
        %v814 = vshrl.u32 %v761, 16
        %v816 = vrot.slane %v814, 4
        %v817 = vshll.u32 %v761, 16
        %v819 = vrot.slane %v817, 5
        %v820 = vor.u32 %v816, %v819
        %v821 = vrot.slane %v820, 4
        %v823 = vshll.u32 %v762, 16
        %v825 = vrot.slane %v823, 5
        %v826 = vsel %vm326, %v821, %v825
        %v828 = vshrl.u32 %v763, 16
        %v830 = vrot.slane %v828, 4
        %v831 = vshll.u32 %v763, 16
        %v833 = vrot.slane %v831, 5
        %v834 = vor.u32 %v830, %v833
        %v835 = vrot.slane %v834, 4
        %v837 = vshll.u32 %v764, 16
        %v839 = vrot.slane %v837, 5
        %v840 = vsel %vm326, %v835, %v839
        %v842 = vshrl.u32 %v765, 16
        %v844 = vrot.slane %v842, 4
        %v845 = vshll.u32 %v765, 16
        %v847 = vrot.slane %v845, 5
        %v848 = vor.u32 %v844, %v847
        %v849 = vrot.slane %v848, 4
        %v851 = vshll.u32 %v766, 16
        %v853 = vrot.slane %v851, 5
        %v854 = vsel %vm326, %v849, %v853
        %v856 = vshrl.u32 %v767, 16
        %v858 = vrot.slane %v856, 4
        %v859 = vshll.u32 %v767, 16
        %v861 = vrot.slane %v859, 5
        %v862 = vor.u32 %v858, %v861
        %v863 = vrot.slane %v862, 4
        %v865 = vshll.u32 %v768, 16
        %v867 = vrot.slane %v865, 5
        %v868 = vsel %vm326, %v863, %v867
        %v870 = vshrl.u32 %v769, 16
        %v872 = vrot.slane %v870, 4
        %v873 = vshll.u32 %v769, 16
        %v875 = vrot.slane %v873, 5
        %v876 = vor.u32 %v872, %v875
        %v877 = vrot.slane %v876, 4
        %v879 = vshll.u32 %v770, 16
        %v881 = vrot.slane %v879, 5
        %v882 = vsel %vm326, %v877, %v881
        %v883 = vunpack.c.l.b16 %v784
        %v884 = vunpack.c.l.b16 %v798
        %v885 = vunpack.c.l.b16 %v812
        %v886 = vunpack.c.l.b16 %v826
        %v887 = vunpack.c.l.b16 %v840
        %v888 = vunpack.c.l.b16 %v854
        %v889 = vunpack.c.l.b16 %v868
        %v890 = vunpack.c.l.b16 %v882
        %v891 = vpack.c.b16 %v884, %v883
        %v892 = vpack.c.b16 %v886, %v885
        %v893 = vpack.c.b16 %v888, %v887
        %v894 = vpack.c.b16 %v890, %v889
        %899 = vst.msk [vmem:[#allocation2 + $0x40] sm:$0xff] %vm266, %v891
        %900 = vst.msk [vmem:[#allocation2 + $0x88] sm:$0xff] %vm266, %v892
        %901 = vst.msk [vmem:[#allocation2 + $0xd0] sm:$0xff] %vm266, %v893
        %902 = vst.msk [vmem:[#allocation2 + $0x118] sm:$0xff] %vm266, %v894
        %v903 = vld [vmem:[#allocation2] sm:$0xff]
        %v904 = vld [vmem:[#allocation2 + $0x8] sm:$0xff]
        %v905 = vld [vmem:[#allocation2 + $0x10] sm:$0xff]
        %v906 = vld [vmem:[#allocation2 + $0x18] sm:$0xff]
        %v907 = vld [vmem:[#allocation2 + $0x20] sm:$0xff]
        %v908 = vld [vmem:[#allocation2 + $0x28] sm:$0xff]
        %v909 = vld [vmem:[#allocation2 + $0x30] sm:$0xff]
        %v910 = vld [vmem:[#allocation2 + $0x38] sm:$0xff]
        %v911 = vld [vmem:[#allocation2 + $0x40] sm:$0xff]
        %v912 = vld [vmem:[#allocation2 + $0x48] sm:$0xff]
        %v913 = vld [vmem:[#allocation2 + $0x50] sm:$0xff]
        %v914 = vld [vmem:[#allocation2 + $0x58] sm:$0xff]
        %v915 = vld [vmem:[#allocation2 + $0x60] sm:$0xff]
        %v916 = vld [vmem:[#allocation2 + $0x68] sm:$0xff]
        %v917 = vld [vmem:[#allocation2 + $0x70] sm:$0xff]
        %v918 = vld [vmem:[#allocation2 + $0x78] sm:$0xff]
        %v919 = vld [vmem:[#allocation2 + $0x80] sm:$0xff]
        %v920 = vld [vmem:[#allocation2 + $0x88] sm:$0xff]
        %v921 = vld [vmem:[#allocation2 + $0x90] sm:$0xff]
        %v922 = vld [vmem:[#allocation2 + $0x98] sm:$0xff]
        %v923 = vld [vmem:[#allocation2 + $0xa0] sm:$0xff]
        %v924 = vld [vmem:[#allocation2 + $0xa8] sm:$0xff]
        %v925 = vld [vmem:[#allocation2 + $0xb0] sm:$0xff]
        %v926 = vld [vmem:[#allocation2 + $0xb8] sm:$0xff]
        %v927 = vld [vmem:[#allocation2 + $0xc0] sm:$0xff]
        %v928 = vld [vmem:[#allocation2 + $0xc8] sm:$0xff]
        %v929 = vld [vmem:[#allocation2 + $0xd0] sm:$0xff]
        %v930 = vld [vmem:[#allocation2 + $0xd8] sm:$0xff]
        %v931 = vld [vmem:[#allocation2 + $0xe0] sm:$0xff]
        %v932 = vld [vmem:[#allocation2 + $0xe8] sm:$0xff]
        %v933 = vld [vmem:[#allocation2 + $0xf0] sm:$0xff]
        %v934 = vld [vmem:[#allocation2 + $0xf8] sm:$0xff]
        %v935 = vld [vmem:[#allocation2 + $0x100] sm:$0xff]
        %v936 = vld [vmem:[#allocation2 + $0x108] sm:$0xff]
        %v937 = vld [vmem:[#allocation2 + $0x110] sm:$0xff]
        %v938 = vld [vmem:[#allocation2 + $0x118] sm:$0xff]
        %v939 = vld [vmem:[%s1] sm:$0xf]
        %v940 = vld [vmem:[%s1 + $0x4] sm:$0xf]
        %v941 = vld [vmem:[%s1 + $0x8] sm:$0xf]
        %v942 = vld [vmem:[%s1 + $0xc] sm:$0xf]
        %v943 = vld [vmem:[%s1 + $0x10] sm:$0xf]
        %v944 = vld [vmem:[%s1 + $0x14] sm:$0xf]
        %v945 = vld [vmem:[%s1 + $0x18] sm:$0xf]
        %v946 = vld [vmem:[%s1 + $0x1c] sm:$0xf]
        %v947 = vld [vmem:[%s1 + $0x20] sm:$0xf]
        %v948 = vld [vmem:[%s1 + $0x24] sm:$0xf]
        %v949 = vld [vmem:[%s1 + $0x28] sm:$0xf]
        %v950 = vld [vmem:[%s1 + $0x2c] sm:$0xf]
        %v951 = vld [vmem:[%s1 + $0x30] sm:$0xf]
        %v952 = vld [vmem:[%s1 + $0x34] sm:$0xf]
        %v953 = vld [vmem:[%s1 + $0x38] sm:$0xf]
        %v954 = vld [vmem:[%s1 + $0x3c] sm:$0xf]
        %v955 = vld [vmem:[%s1 + $0x40] sm:$0xf]
        %v956 = vld [vmem:[%s1 + $0x44] sm:$0xf]
        %v957 = vld [vmem:[%s1 + $0x48] sm:$0xf]
        %v958 = vld [vmem:[%s1 + $0x4c] sm:$0xf]
        %v959 = vld [vmem:[%s1 + $0x50] sm:$0xf]
        %v960 = vld [vmem:[%s1 + $0x54] sm:$0xf]
        %v961 = vld [vmem:[%s1 + $0x58] sm:$0xf]
        %v962 = vld [vmem:[%s1 + $0x5c] sm:$0xf]
        %v963 = vld [vmem:[%s1 + $0x60] sm:$0xf]
        %v964 = vld [vmem:[%s1 + $0x64] sm:$0xf]
        %v965 = vld [vmem:[%s1 + $0x68] sm:$0xf]
        %v966 = vld [vmem:[%s1 + $0x6c] sm:$0xf]
        %v967 = vld [vmem:[%s1 + $0x70] sm:$0xf]
        %v968 = vld [vmem:[%s1 + $0x74] sm:$0xf]
        %v969 = vld [vmem:[%s1 + $0x78] sm:$0xf]
        %v970 = vld [vmem:[%s1 + $0x7c] sm:$0xf]
        %v971 = vld [vmem:[%s1 + $0x80] sm:$0xf]
        %v972 = vld [vmem:[%s1 + $0x84] sm:$0xf]
        %v973 = vld [vmem:[%s1 + $0x88] sm:$0xf]
        %v974 = vld [vmem:[%s1 + $0x8c] sm:$0xf]
        %v975 = vld [vmem:[%s1 + $0x90] sm:$0xf]
        %v976 = vld [vmem:[%s1 + $0x94] sm:$0xf]
        %v977 = vld [vmem:[%s1 + $0x98] sm:$0xf]
        %v978 = vld [vmem:[%s1 + $0x9c] sm:$0xf]
        %v979 = vld [vmem:[%s1 + $0xa0] sm:$0xf]
        %v980 = vld [vmem:[%s1 + $0xa4] sm:$0xf]
        %v981 = vld [vmem:[%s1 + $0xa8] sm:$0xf]
        %v982 = vld [vmem:[%s1 + $0xac] sm:$0xf]
        %v983 = vld [vmem:[%s1 + $0xb0] sm:$0xf]
        %v984 = vld [vmem:[%s1 + $0xb4] sm:$0xf]
        %v985 = vld [vmem:[%s1 + $0xb8] sm:$0xf]
        %v986 = vld [vmem:[%s1 + $0xbc] sm:$0xf]
        %v987 = vld [vmem:[%s1 + $0xc0] sm:$0xf]
        %v988 = vld [vmem:[%s1 + $0xc4] sm:$0xf]
        %v989 = vld [vmem:[%s1 + $0xc8] sm:$0xf]
        %v990 = vld [vmem:[%s1 + $0xcc] sm:$0xf]
        %v991 = vld [vmem:[%s1 + $0xd0] sm:$0xf]
        %v992 = vld [vmem:[%s1 + $0xd4] sm:$0xf]
        %v993 = vld [vmem:[%s1 + $0xd8] sm:$0xf]
        %v994 = vld [vmem:[%s1 + $0xdc] sm:$0xf]
        %v995 = vld [vmem:[%s1 + $0xe0] sm:$0xf]
        %v996 = vld [vmem:[%s1 + $0xe4] sm:$0xf]
        %v997 = vld [vmem:[%s1 + $0xe8] sm:$0xf]
        %v998 = vld [vmem:[%s1 + $0xec] sm:$0xf]
        %v999 = vld [vmem:[%s1 + $0xf0] sm:$0xf]
        %v1000 = vld [vmem:[%s1 + $0xf4] sm:$0xf]
        %v1001 = vld [vmem:[%s1 + $0xf8] sm:$0xf]
        %v1002 = vld [vmem:[%s1 + $0xfc] sm:$0xf]
        %v1003 = vld [vmem:[%s1 + $0x100] sm:$0xf]
        %v1004 = vld [vmem:[%s1 + $0x104] sm:$0xf]
        %v1005 = vld [vmem:[%s1 + $0x108] sm:$0xf]
        %v1006 = vld [vmem:[%s1 + $0x10c] sm:$0xf]
        %v1007 = vld [vmem:[%s1 + $0x110] sm:$0xf]
        %v1008 = vld [vmem:[%s1 + $0x114] sm:$0xf]
        %v1009 = vld [vmem:[%s1 + $0x118] sm:$0xf]
        %v1010 = vld [vmem:[%s1 + $0x11c] sm:$0xf]
        %v1011 = vld [vmem:[%s1 + $0x120] sm:$0xf]
        %v1012 = vld [vmem:[%s1 + $0x124] sm:$0xf]
        %v1013 = vld [vmem:[%s1 + $0x128] sm:$0xf]
        %v1014 = vld [vmem:[%s1 + $0x12c] sm:$0xf]
        %v1015 = vld [vmem:[%s1 + $0x130] sm:$0xf]
        %v1016 = vld [vmem:[%s1 + $0x134] sm:$0xf]
        %v1017 = vld [vmem:[%s1 + $0x138] sm:$0xf]
        %v1018 = vld [vmem:[%s1 + $0x13c] sm:$0xf]
        %v1019 = vld [vmem:[%s1 + $0x140] sm:$0xf]
        %v1020 = vld [vmem:[%s1 + $0x144] sm:$0xf]
        %v1021 = vld [vmem:[%s1 + $0x148] sm:$0xf]
        %v1022 = vld [vmem:[%s1 + $0x14c] sm:$0xf]
        %v1023 = vld [vmem:[%s1 + $0x150] sm:$0xf]
        %v1024 = vld [vmem:[%s1 + $0x154] sm:$0xf]
        %v1025 = vld [vmem:[%s1 + $0x158] sm:$0xf]
        %v1026 = vld [vmem:[%s1 + $0x15c] sm:$0xf]
        %v1027 = vld [vmem:[%s1 + $0x160] sm:$0xf]
        %v1028 = vld [vmem:[%s1 + $0x164] sm:$0xf]
        %v1029 = vld [vmem:[%s1 + $0x168] sm:$0xf]
        %v1030 = vld [vmem:[%s1 + $0x16c] sm:$0xf]
        %v1031 = vld [vmem:[%s1 + $0x170] sm:$0xf]
        %v1032 = vld [vmem:[%s1 + $0x174] sm:$0xf]
        %v1033 = vld [vmem:[%s1 + $0x178] sm:$0xf]
        %v1034 = vld [vmem:[%s1 + $0x17c] sm:$0xf]
        %v1035 = vld [vmem:[%s1 + $0x180] sm:$0xf]
        %v1036 = vld [vmem:[%s1 + $0x184] sm:$0xf]
        %v1037 = vld [vmem:[%s1 + $0x188] sm:$0xf]
        %v1038 = vld [vmem:[%s1 + $0x18c] sm:$0xf]
        %v1039 = vld [vmem:[%s1 + $0x190] sm:$0xf]
        %v1040 = vld [vmem:[%s1 + $0x194] sm:$0xf]
        %v1041 = vld [vmem:[%s1 + $0x198] sm:$0xf]
        %v1042 = vld [vmem:[%s1 + $0x19c] sm:$0xf]
        %v1043 = vld [vmem:[%s1 + $0x1a0] sm:$0xf]
        %v1044 = vld [vmem:[%s1 + $0x1a4] sm:$0xf]
        %v1045 = vld [vmem:[%s1 + $0x1a8] sm:$0xf]
        %v1046 = vld [vmem:[%s1 + $0x1ac] sm:$0xf]
        %v1047 = vld [vmem:[%s1 + $0x1b0] sm:$0xf]
        %v1048 = vld [vmem:[%s1 + $0x1b4] sm:$0xf]
        %v1049 = vld [vmem:[%s1 + $0x1b8] sm:$0xf]
        %v1050 = vld [vmem:[%s1 + $0x1bc] sm:$0xf]
        %v1051 = vld [vmem:[%s1 + $0x1c0] sm:$0xf]
        %v1052 = vld [vmem:[%s1 + $0x1c4] sm:$0xf]
        %v1053 = vld [vmem:[%s1 + $0x1c8] sm:$0xf]
        %v1054 = vld [vmem:[%s1 + $0x1cc] sm:$0xf]
        %v1055 = vld [vmem:[%s1 + $0x1d0] sm:$0xf]
        %v1056 = vld [vmem:[%s1 + $0x1d4] sm:$0xf]
        %v1057 = vld [vmem:[%s1 + $0x1d8] sm:$0xf]
        %v1058 = vld [vmem:[%s1 + $0x1dc] sm:$0xf]
        %v1059 = vld [vmem:[%s1 + $0x1e0] sm:$0xf]
        %v1060 = vld [vmem:[%s1 + $0x1e4] sm:$0xf]
        %v1061 = vld [vmem:[%s1 + $0x1e8] sm:$0xf]
        %v1062 = vld [vmem:[%s1 + $0x1ec] sm:$0xf]
        %v1063 = vld [vmem:[%s1 + $0x1f0] sm:$0xf]
        %v1064 = vld [vmem:[%s1 + $0x1f4] sm:$0xf]
        %v1065 = vld [vmem:[%s1 + $0x1f8] sm:$0xf]
        %v1066 = vld [vmem:[%s1 + $0x1fc] sm:$0xf]
        %v1067 = vld [vmem:[%s1 + $0x200] sm:$0xf]
        %v1068 = vld [vmem:[%s1 + $0x204] sm:$0xf]
        %v1069 = vld [vmem:[%s1 + $0x208] sm:$0xf]
        %v1070 = vld [vmem:[%s1 + $0x20c] sm:$0xf]
        %v1071 = vld [vmem:[%s1 + $0x210] sm:$0xf]
        %v1072 = vld [vmem:[%s1 + $0x214] sm:$0xf]
        %v1073 = vld [vmem:[%s1 + $0x218] sm:$0xf]
        %v1074 = vld [vmem:[%s1 + $0x21c] sm:$0xf]
        %v1075 = vld [vmem:[%s1 + $0x220] sm:$0xf]
        %v1076 = vld [vmem:[%s1 + $0x224] sm:$0xf]
        %v1077 = vld [vmem:[%s1 + $0x228] sm:$0xf]
        %v1078 = vld [vmem:[%s1 + $0x22c] sm:$0xf]
        %v1079 = vld [vmem:[%s1 + $0x230] sm:$0xf]
        %v1080 = vld [vmem:[%s1 + $0x234] sm:$0xf]
        %v1081 = vld [vmem:[%s1 + $0x238] sm:$0xf]
        %v1082 = vld [vmem:[%s1 + $0x23c] sm:$0xf]
        %v1227 = vunpack.c.l.b16 %v939
        %v1228 = vunpack.c.l.b16 %v940
        %v1229 = vunpack.c.l.b16 %v941
        %v1230 = vunpack.c.l.b16 %v942
        %v1231 = vunpack.c.l.b16 %v943
        %v1232 = vunpack.c.l.b16 %v944
        %v1233 = vunpack.c.l.b16 %v945
        %v1234 = vunpack.c.l.b16 %v946
        %v1235 = vunpack.c.l.b16 %v947
        %v1236 = vunpack.c.l.b16 %v948
        %v1237 = vunpack.c.l.b16 %v949
        %v1238 = vunpack.c.l.b16 %v950
        %v1239 = vunpack.c.l.b16 %v951
        %v1240 = vunpack.c.l.b16 %v952
        %v1241 = vunpack.c.l.b16 %v953
        %v1242 = vunpack.c.l.b16 %v954
        %v1243 = vunpack.c.l.b16 %v955
        %v1244 = vunpack.c.l.b16 %v956
        %v1245 = vunpack.c.l.b16 %v957
        %v1246 = vunpack.c.l.b16 %v958
        %v1247 = vunpack.c.l.b16 %v959
        %v1248 = vunpack.c.l.b16 %v960
        %v1249 = vunpack.c.l.b16 %v961
        %v1250 = vunpack.c.l.b16 %v962
        %v1251 = vunpack.c.l.b16 %v963
        %v1252 = vunpack.c.l.b16 %v964
        %v1253 = vunpack.c.l.b16 %v965
        %v1254 = vunpack.c.l.b16 %v966
        %v1255 = vunpack.c.l.b16 %v967
        %v1256 = vunpack.c.l.b16 %v968
        %v1257 = vunpack.c.l.b16 %v969
        %v1258 = vunpack.c.l.b16 %v970
        %v1259 = vunpack.c.l.b16 %v971
        %v1260 = vunpack.c.l.b16 %v972
        %v1261 = vunpack.c.l.b16 %v973
        %v1262 = vunpack.c.l.b16 %v974
        %v1263 = vunpack.c.l.b16 %v975
        %v1264 = vunpack.c.l.b16 %v976
        %v1265 = vunpack.c.l.b16 %v977
        %v1266 = vunpack.c.l.b16 %v978
        %v1267 = vunpack.c.l.b16 %v979
        %v1268 = vunpack.c.l.b16 %v980
        %v1269 = vunpack.c.l.b16 %v981
        %v1270 = vunpack.c.l.b16 %v982
        %v1271 = vunpack.c.l.b16 %v983
        %v1272 = vunpack.c.l.b16 %v984
        %v1273 = vunpack.c.l.b16 %v985
        %v1274 = vunpack.c.l.b16 %v986
        %v1275 = vunpack.c.l.b16 %v987
        %v1276 = vunpack.c.l.b16 %v988
        %v1277 = vunpack.c.l.b16 %v989
        %v1278 = vunpack.c.l.b16 %v990
        %v1279 = vunpack.c.l.b16 %v991
        %v1280 = vunpack.c.l.b16 %v992
        %v1281 = vunpack.c.l.b16 %v993
        %v1282 = vunpack.c.l.b16 %v994
        %v1283 = vunpack.c.l.b16 %v995
        %v1284 = vunpack.c.l.b16 %v996
        %v1285 = vunpack.c.l.b16 %v997
        %v1286 = vunpack.c.l.b16 %v998
        %v1287 = vunpack.c.l.b16 %v999
        %v1288 = vunpack.c.l.b16 %v1000
        %v1289 = vunpack.c.l.b16 %v1001
        %v1290 = vunpack.c.l.b16 %v1002
        %v1291 = vunpack.c.l.b16 %v1003
        %v1292 = vunpack.c.l.b16 %v1004
        %v1293 = vunpack.c.l.b16 %v1005
        %v1294 = vunpack.c.l.b16 %v1006
        %v1295 = vunpack.c.l.b16 %v1007
        %v1296 = vunpack.c.l.b16 %v1008
        %v1297 = vunpack.c.l.b16 %v1009
        %v1298 = vunpack.c.l.b16 %v1010
        %v1299 = vunpack.c.l.b16 %v1011
        %v1300 = vunpack.c.l.b16 %v1012
        %v1301 = vunpack.c.l.b16 %v1013
        %v1302 = vunpack.c.l.b16 %v1014
        %v1303 = vunpack.c.l.b16 %v1015
        %v1304 = vunpack.c.l.b16 %v1016
        %v1305 = vunpack.c.l.b16 %v1017
        %v1306 = vunpack.c.l.b16 %v1018
        %v1307 = vunpack.c.l.b16 %v1019
        %v1308 = vunpack.c.l.b16 %v1020
        %v1309 = vunpack.c.l.b16 %v1021
        %v1310 = vunpack.c.l.b16 %v1022
        %v1311 = vunpack.c.l.b16 %v1023
        %v1312 = vunpack.c.l.b16 %v1024
        %v1313 = vunpack.c.l.b16 %v1025
        %v1314 = vunpack.c.l.b16 %v1026
        %v1315 = vunpack.c.l.b16 %v1027
        %v1316 = vunpack.c.l.b16 %v1028
        %v1317 = vunpack.c.l.b16 %v1029
        %v1318 = vunpack.c.l.b16 %v1030
        %v1319 = vunpack.c.l.b16 %v1031
        %v1320 = vunpack.c.l.b16 %v1032
        %v1321 = vunpack.c.l.b16 %v1033
        %v1322 = vunpack.c.l.b16 %v1034
        %v1323 = vunpack.c.l.b16 %v1035
        %v1324 = vunpack.c.l.b16 %v1036
        %v1325 = vunpack.c.l.b16 %v1037
        %v1326 = vunpack.c.l.b16 %v1038
        %v1327 = vunpack.c.l.b16 %v1039
        %v1328 = vunpack.c.l.b16 %v1040
        %v1329 = vunpack.c.l.b16 %v1041
        %v1330 = vunpack.c.l.b16 %v1042
        %v1331 = vunpack.c.l.b16 %v1043
        %v1332 = vunpack.c.l.b16 %v1044
        %v1333 = vunpack.c.l.b16 %v1045
        %v1334 = vunpack.c.l.b16 %v1046
        %v1335 = vunpack.c.l.b16 %v1047
        %v1336 = vunpack.c.l.b16 %v1048
        %v1337 = vunpack.c.l.b16 %v1049
        %v1338 = vunpack.c.l.b16 %v1050
        %v1339 = vunpack.c.l.b16 %v1051
        %v1340 = vunpack.c.l.b16 %v1052
        %v1341 = vunpack.c.l.b16 %v1053
        %v1342 = vunpack.c.l.b16 %v1054
        %v1343 = vunpack.c.l.b16 %v1055
        %v1344 = vunpack.c.l.b16 %v1056
        %v1345 = vunpack.c.l.b16 %v1057
        %v1346 = vunpack.c.l.b16 %v1058
        %v1347 = vunpack.c.l.b16 %v1059
        %v1348 = vunpack.c.l.b16 %v1060
        %v1349 = vunpack.c.l.b16 %v1061
        %v1350 = vunpack.c.l.b16 %v1062
        %v1351 = vunpack.c.l.b16 %v1063
        %v1352 = vunpack.c.l.b16 %v1064
        %v1353 = vunpack.c.l.b16 %v1065
        %v1354 = vunpack.c.l.b16 %v1066
        %v1355 = vunpack.c.l.b16 %v1067
        %v1356 = vunpack.c.l.b16 %v1068
        %v1357 = vunpack.c.l.b16 %v1069
        %v1358 = vunpack.c.l.b16 %v1070
        %v1359 = vunpack.c.l.b16 %v1071
        %v1360 = vunpack.c.l.b16 %v1072
        %v1361 = vunpack.c.l.b16 %v1073
        %v1362 = vunpack.c.l.b16 %v1074
        %v1363 = vunpack.c.l.b16 %v1075
        %v1364 = vunpack.c.l.b16 %v1076
        %v1365 = vunpack.c.l.b16 %v1077
        %v1366 = vunpack.c.l.b16 %v1078
        %v1367 = vunpack.c.l.b16 %v1079
        %v1368 = vunpack.c.l.b16 %v1080
        %v1369 = vunpack.c.l.b16 %v1081
        %v1370 = vunpack.c.l.b16 %v1082
        %v1371 = vpack.c.b16 %v1228, %v1227
        %v1372 = vpack.c.b16 %v1230, %v1229
        %v1373 = vpack.c.b16 %v1232, %v1231
        %v1374 = vpack.c.b16 %v1234, %v1233
        %v1375 = vpack.c.b16 %v1236, %v1235
        %v1376 = vpack.c.b16 %v1238, %v1237
        %v1377 = vpack.c.b16 %v1240, %v1239
        %v1378 = vpack.c.b16 %v1242, %v1241
        %v1379 = vpack.c.b16 %v1244, %v1243
        %v1380 = vpack.c.b16 %v1246, %v1245
        %v1381 = vpack.c.b16 %v1248, %v1247
        %v1382 = vpack.c.b16 %v1250, %v1249
        %v1383 = vpack.c.b16 %v1252, %v1251
        %v1384 = vpack.c.b16 %v1254, %v1253
        %v1385 = vpack.c.b16 %v1256, %v1255
        %v1386 = vpack.c.b16 %v1258, %v1257
        %v1387 = vpack.c.b16 %v1260, %v1259
        %v1388 = vpack.c.b16 %v1262, %v1261
        %v1389 = vpack.c.b16 %v1264, %v1263
        %v1390 = vpack.c.b16 %v1266, %v1265
        %v1391 = vpack.c.b16 %v1268, %v1267
        %v1392 = vpack.c.b16 %v1270, %v1269
        %v1393 = vpack.c.b16 %v1272, %v1271
        %v1394 = vpack.c.b16 %v1274, %v1273
        %v1395 = vpack.c.b16 %v1276, %v1275
        %v1396 = vpack.c.b16 %v1278, %v1277
        %v1397 = vpack.c.b16 %v1280, %v1279
        %v1398 = vpack.c.b16 %v1282, %v1281
        %v1399 = vpack.c.b16 %v1284, %v1283
        %v1400 = vpack.c.b16 %v1286, %v1285
        %v1401 = vpack.c.b16 %v1288, %v1287
        %v1402 = vpack.c.b16 %v1290, %v1289
        %v1403 = vpack.c.b16 %v1292, %v1291
        %v1404 = vpack.c.b16 %v1294, %v1293
        %v1405 = vpack.c.b16 %v1296, %v1295
        %v1406 = vpack.c.b16 %v1298, %v1297
        %v1407 = vpack.c.b16 %v1300, %v1299
        %v1408 = vpack.c.b16 %v1302, %v1301
        %v1409 = vpack.c.b16 %v1304, %v1303
        %v1410 = vpack.c.b16 %v1306, %v1305
        %v1411 = vpack.c.b16 %v1308, %v1307
        %v1412 = vpack.c.b16 %v1310, %v1309
        %v1413 = vpack.c.b16 %v1312, %v1311
        %v1414 = vpack.c.b16 %v1314, %v1313
        %v1415 = vpack.c.b16 %v1316, %v1315
        %v1416 = vpack.c.b16 %v1318, %v1317
        %v1417 = vpack.c.b16 %v1320, %v1319
        %v1418 = vpack.c.b16 %v1322, %v1321
        %v1419 = vpack.c.b16 %v1324, %v1323
        %v1420 = vpack.c.b16 %v1326, %v1325
        %v1421 = vpack.c.b16 %v1328, %v1327
        %v1422 = vpack.c.b16 %v1330, %v1329
        %v1423 = vpack.c.b16 %v1332, %v1331
        %v1424 = vpack.c.b16 %v1334, %v1333
        %v1425 = vpack.c.b16 %v1336, %v1335
        %v1426 = vpack.c.b16 %v1338, %v1337
        %v1427 = vpack.c.b16 %v1340, %v1339
        %v1428 = vpack.c.b16 %v1342, %v1341
        %v1429 = vpack.c.b16 %v1344, %v1343
        %v1430 = vpack.c.b16 %v1346, %v1345
        %v1431 = vpack.c.b16 %v1348, %v1347
        %v1432 = vpack.c.b16 %v1350, %v1349
        %v1433 = vpack.c.b16 %v1352, %v1351
        %v1434 = vpack.c.b16 %v1354, %v1353
        %v1435 = vpack.c.b16 %v1356, %v1355
        %v1436 = vpack.c.b16 %v1358, %v1357
        %v1437 = vpack.c.b16 %v1360, %v1359
        %v1438 = vpack.c.b16 %v1362, %v1361
        %v1439 = vpack.c.b16 %v1364, %v1363
        %v1440 = vpack.c.b16 %v1366, %v1365
        %v1441 = vpack.c.b16 %v1368, %v1367
        %v1442 = vpack.c.b16 %v1370, %v1369
        %1515 = vmatprep.subr.bf16.mxu0 0
        %1516 = vmatpush1.bf16.msra.mxu0 %v1371
        %1517 = vmatprep.subr.bf16.mxu0 0
        %1518 = vmatpush1.bf16.msra.mxu0 %v1372
        %1519 = vmatprep.subr.bf16.mxu0 0
        %1520 = vmatpush1.bf16.msra.mxu0 %v1373
        %1521 = vmatprep.subr.bf16.mxu0 0
        %1522 = vmatpush1.bf16.msra.mxu0 %v1374
        %1523 = vmatprep.subr.bf16.mxu0 0
        %1524 = vmatpush1.bf16.msra.mxu0 %v1375
        %1525 = vmatprep.subr.bf16.mxu0 0
        %1526 = vmatpush1.bf16.msra.mxu0 %v1376
        %1527 = vmatprep.subr.bf16.mxu0 0
        %1528 = vmatpush1.bf16.msra.mxu0 %v1377
        %1529 = vmatprep.subr.bf16.mxu0 0
        %1530 = vmatpush1.bf16.msra.mxu0 %v1378
        %1531 = vmatprep.subr.bf16.mxu0 0
        %1532 = vmatpush1.bf16.msra.mxu0 %v1379
        %1533 = vmatprep.subr.bf16.mxu0 0
        %1534 = vmatpush1.bf16.msra.mxu0 %v1380
        %1535 = vmatprep.subr.bf16.mxu0 0
        %1536 = vmatpush1.bf16.msra.mxu0 %v1381
        %1537 = vmatprep.subr.bf16.mxu0 0
        %1538 = vmatpush1.bf16.msra.mxu0 %v1382
        %1539 = vmatprep.subr.bf16.mxu0 0
        %1540 = vmatpush1.bf16.msra.mxu0 %v1383
        %1541 = vmatprep.subr.bf16.mxu0 0
        %1542 = vmatpush1.bf16.msra.mxu0 %v1384
        %1543 = vmatprep.subr.bf16.mxu0 0
        %1544 = vmatpush1.bf16.msra.mxu0 %v1385
        %1545 = vmatprep.subr.bf16.mxu0 0
        %1546 = vmatpush1.bf16.msra.mxu0 %v1386
        %1547 = vmatprep.mubr.bf16.mxu0 %v904
        %1548 = vmatmul.mubr.bf16.gmra.mrb[0].mxu0 %v903
        %v1549 = vpop.f32.mrb[0].mxu0
        %v1550 = vadd.f32 0.0, %v1549
        %v1551 = vpop.f32.mrb[0].mxu0
        %v1552 = vpop.f32.mrb[0].mxu0
        %v1553 = vadd.f32 0.0, %v1552
        %v1554 = vpop.f32.mrb[0].mxu0
        %1555 = vmatprep.mubr.bf16.mxu0 %v913
        %1556 = vmatmul.mubr.bf16.gmra.mrb[0].mxu0 %v912
        %v1557 = vpop.f32.mrb[0].mxu0
        %v1558 = vadd.f32 0.0, %v1557
        %v1559 = vpop.f32.mrb[0].mxu0
        %v1560 = vpop.f32.mrb[0].mxu0
        %v1561 = vadd.f32 0.0, %v1560
        %v1562 = vpop.f32.mrb[0].mxu0
        %1563 = vmatprep.mubr.bf16.mxu0 %v922
        %1564 = vmatmul.mubr.bf16.gmra.mrb[0].mxu0 %v921
        %v1565 = vpop.f32.mrb[0].mxu0
        %v1566 = vadd.f32 0.0, %v1565
        %v1567 = vpop.f32.mrb[0].mxu0
        %v1568 = vpop.f32.mrb[0].mxu0
        %v1569 = vadd.f32 0.0, %v1568
        %v1570 = vpop.f32.mrb[0].mxu0
        %1571 = vmatprep.mubr.bf16.mxu0 %v931
        %1572 = vmatmul.mubr.bf16.gmra.mrb[0].mxu0 %v930
        %v1573 = vpop.f32.mrb[0].mxu0
        %v1574 = vadd.f32 0.0, %v1573
        %v1575 = vpop.f32.mrb[0].mxu0
        %v1576 = vpop.f32.mrb[0].mxu0
        %v1577 = vadd.f32 0.0, %v1576
        %v1578 = vpop.f32.mrb[0].mxu0
        %1579 = vdwg.mxu0
        %1580 = vmatprep.subr.bf16.mxu0 0
        %1581 = vmatpush1.bf16.msra.mxu0 %v1387
        %1582 = vmatprep.subr.bf16.mxu0 0
        %1583 = vmatpush1.bf16.msra.mxu0 %v1388
        %1584 = vmatprep.subr.bf16.mxu0 0
        %1585 = vmatpush1.bf16.msra.mxu0 %v1389
        %1586 = vmatprep.subr.bf16.mxu0 0
        %1587 = vmatpush1.bf16.msra.mxu0 %v1390
        %1588 = vmatprep.subr.bf16.mxu0 0
        %1589 = vmatpush1.bf16.msra.mxu0 %v1391
        %1590 = vmatprep.subr.bf16.mxu0 0
        %1591 = vmatpush1.bf16.msra.mxu0 %v1392
        %1592 = vmatprep.subr.bf16.mxu0 0
        %1593 = vmatpush1.bf16.msra.mxu0 %v1393
        %1594 = vmatprep.subr.bf16.mxu0 0
        %1595 = vmatpush1.bf16.msra.mxu0 %v1394
        %1596 = vmatprep.subr.bf16.mxu0 0
        %1597 = vmatpush1.bf16.msra.mxu0 %v1395
        %1598 = vmatprep.subr.bf16.mxu0 0
        %1599 = vmatpush1.bf16.msra.mxu0 %v1396
        %1600 = vmatprep.subr.bf16.mxu0 0
        %1601 = vmatpush1.bf16.msra.mxu0 %v1397
        %1602 = vmatprep.subr.bf16.mxu0 0
        %1603 = vmatpush1.bf16.msra.mxu0 %v1398
        %1604 = vmatprep.subr.bf16.mxu0 0
        %1605 = vmatpush1.bf16.msra.mxu0 %v1399
        %1606 = vmatprep.subr.bf16.mxu0 0
        %1607 = vmatpush1.bf16.msra.mxu0 %v1400
        %1608 = vmatprep.subr.bf16.mxu0 0
        %1609 = vmatpush1.bf16.msra.mxu0 %v1401
        %1610 = vmatprep.subr.bf16.mxu0 0
        %1611 = vmatpush1.bf16.msra.mxu0 %v1402
        %1612 = vmatprep.mubr.bf16.mxu0 %v906
        %1613 = vmatmul.mubr.bf16.gmra.mrb[0].mxu0 %v905
        %v1614 = vpop.f32.mrb[0].mxu0
        %v1615 = vadd.f32 %v1550, %v1614
        %v1616 = vpop.f32.mrb[0].mxu0
        %v1617 = vpop.f32.mrb[0].mxu0
        %v1618 = vadd.f32 %v1553, %v1617
        %v1619 = vpop.f32.mrb[0].mxu0
        %1620 = vmatprep.mubr.bf16.mxu0 %v915
        %1621 = vmatmul.mubr.bf16.gmra.mrb[0].mxu0 %v914
        %v1622 = vpop.f32.mrb[0].mxu0
        %v1623 = vadd.f32 %v1558, %v1622
        %v1624 = vpop.f32.mrb[0].mxu0
        %v1625 = vpop.f32.mrb[0].mxu0
        %v1626 = vadd.f32 %v1561, %v1625
        %v1627 = vpop.f32.mrb[0].mxu0
        %1628 = vmatprep.mubr.bf16.mxu0 %v924
        %1629 = vmatmul.mubr.bf16.gmra.mrb[0].mxu0 %v923
        %v1630 = vpop.f32.mrb[0].mxu0
        %v1631 = vadd.f32 %v1566, %v1630
        %v1632 = vpop.f32.mrb[0].mxu0
        %v1633 = vpop.f32.mrb[0].mxu0
        %v1634 = vadd.f32 %v1569, %v1633
        %v1635 = vpop.f32.mrb[0].mxu0
        %1636 = vmatprep.mubr.bf16.mxu0 %v933
        %1637 = vmatmul.mubr.bf16.gmra.mrb[0].mxu0 %v932
        %v1638 = vpop.f32.mrb[0].mxu0
        %v1639 = vadd.f32 %v1574, %v1638
        %v1640 = vpop.f32.mrb[0].mxu0
        %v1641 = vpop.f32.mrb[0].mxu0
        %v1642 = vadd.f32 %v1577, %v1641
        %v1643 = vpop.f32.mrb[0].mxu0
        %1644 = vdwg.mxu0
        %1645 = vmatprep.subr.bf16.mxu0 0
        %1646 = vmatpush1.bf16.msra.mxu0 %v1403
        %1647 = vmatprep.subr.bf16.mxu0 0
        %1648 = vmatpush1.bf16.msra.mxu0 %v1404
        %1649 = vmatprep.subr.bf16.mxu0 0
        %1650 = vmatpush1.bf16.msra.mxu0 %v1405
        %1651 = vmatprep.subr.bf16.mxu0 0
        %1652 = vmatpush1.bf16.msra.mxu0 %v1406
        %1653 = vmatprep.subr.bf16.mxu0 0
        %1654 = vmatpush1.bf16.msra.mxu0 %v1407
        %1655 = vmatprep.subr.bf16.mxu0 0
        %1656 = vmatpush1.bf16.msra.mxu0 %v1408
        %1657 = vmatprep.subr.bf16.mxu0 0
        %1658 = vmatpush1.bf16.msra.mxu0 %v1409
        %1659 = vmatprep.subr.bf16.mxu0 0
        %1660 = vmatpush1.bf16.msra.mxu0 %v1410
        %1661 = vmatprep.subr.bf16.mxu0 0
        %1662 = vmatpush1.bf16.msra.mxu0 %v1411
        %1663 = vmatprep.subr.bf16.mxu0 0
        %1664 = vmatpush1.bf16.msra.mxu0 %v1412
        %1665 = vmatprep.subr.bf16.mxu0 0
        %1666 = vmatpush1.bf16.msra.mxu0 %v1413
        %1667 = vmatprep.subr.bf16.mxu0 0
        %1668 = vmatpush1.bf16.msra.mxu0 %v1414
        %1669 = vmatprep.subr.bf16.mxu0 0
        %1670 = vmatpush1.bf16.msra.mxu0 %v1415
        %1671 = vmatprep.subr.bf16.mxu0 0
        %1672 = vmatpush1.bf16.msra.mxu0 %v1416
        %1673 = vmatprep.subr.bf16.mxu0 0
        %1674 = vmatpush1.bf16.msra.mxu0 %v1417
        %1675 = vmatprep.subr.bf16.mxu0 0
        %1676 = vmatpush1.bf16.msra.mxu0 %v1418
        %1677 = vmatprep.mubr.bf16.mxu0 %v908
        %1678 = vmatmul.mubr.bf16.gmra.mrb[0].mxu0 %v907
        %v1679 = vpop.f32.mrb[0].mxu0
        %v1680 = vadd.f32 %v1615, %v1679
        %v1681 = vpop.f32.mrb[0].mxu0
        %v1682 = vpop.f32.mrb[0].mxu0
        %v1683 = vadd.f32 %v1618, %v1682
        %v1684 = vpop.f32.mrb[0].mxu0
        %1685 = vmatprep.mubr.bf16.mxu0 %v917
        %1686 = vmatmul.mubr.bf16.gmra.mrb[0].mxu0 %v916
        %v1687 = vpop.f32.mrb[0].mxu0
        %v1688 = vadd.f32 %v1623, %v1687
        %v1689 = vpop.f32.mrb[0].mxu0
        %v1690 = vpop.f32.mrb[0].mxu0
        %v1691 = vadd.f32 %v1626, %v1690
        %v1692 = vpop.f32.mrb[0].mxu0
        %1693 = vmatprep.mubr.bf16.mxu0 %v926
        %1694 = vmatmul.mubr.bf16.gmra.mrb[0].mxu0 %v925
        %v1695 = vpop.f32.mrb[0].mxu0
        %v1696 = vadd.f32 %v1631, %v1695
        %v1697 = vpop.f32.mrb[0].mxu0
        %v1698 = vpop.f32.mrb[0].mxu0
        %v1699 = vadd.f32 %v1634, %v1698
        %v1700 = vpop.f32.mrb[0].mxu0
        %1701 = vmatprep.mubr.bf16.mxu0 %v935
        %1702 = vmatmul.mubr.bf16.gmra.mrb[0].mxu0 %v934
        %v1703 = vpop.f32.mrb[0].mxu0
        %v1704 = vadd.f32 %v1639, %v1703
        %v1705 = vpop.f32.mrb[0].mxu0
        %v1706 = vpop.f32.mrb[0].mxu0
        %v1707 = vadd.f32 %v1642, %v1706
        %v1708 = vpop.f32.mrb[0].mxu0
        %1709 = vdwg.mxu0
        %1710 = vmatprep.subr.bf16.mxu0 0
        %1711 = vmatpush1.bf16.msra.mxu0 %v1419
        %1712 = vmatprep.subr.bf16.mxu0 0
        %1713 = vmatpush1.bf16.msra.mxu0 %v1420
        %1714 = vmatprep.subr.bf16.mxu0 0
        %1715 = vmatpush1.bf16.msra.mxu0 %v1421
        %1716 = vmatprep.subr.bf16.mxu0 0
        %1717 = vmatpush1.bf16.msra.mxu0 %v1422
        %1718 = vmatprep.subr.bf16.mxu0 0
        %1719 = vmatpush1.bf16.msra.mxu0 %v1423
        %1720 = vmatprep.subr.bf16.mxu0 0
        %1721 = vmatpush1.bf16.msra.mxu0 %v1424
        %1722 = vmatprep.subr.bf16.mxu0 0
        %1723 = vmatpush1.bf16.msra.mxu0 %v1425
        %1724 = vmatprep.subr.bf16.mxu0 0
        %1725 = vmatpush1.bf16.msra.mxu0 %v1426
        %1726 = vmatprep.subr.bf16.mxu0 0
        %1727 = vmatpush1.bf16.msra.mxu0 %v1427
        %1728 = vmatprep.subr.bf16.mxu0 0
        %1729 = vmatpush1.bf16.msra.mxu0 %v1428
        %1730 = vmatprep.subr.bf16.mxu0 0
        %1731 = vmatpush1.bf16.msra.mxu0 %v1429
        %1732 = vmatprep.subr.bf16.mxu0 0
        %1733 = vmatpush1.bf16.msra.mxu0 %v1430
        %1734 = vmatprep.subr.bf16.mxu0 0
        %1735 = vmatpush1.bf16.msra.mxu0 %v1431
        %1736 = vmatprep.subr.bf16.mxu0 0
        %1737 = vmatpush1.bf16.msra.mxu0 %v1432
        %1738 = vmatprep.subr.bf16.mxu0 0
        %1739 = vmatpush1.bf16.msra.mxu0 %v1433
        %1740 = vmatprep.subr.bf16.mxu0 0
        %1741 = vmatpush1.bf16.msra.mxu0 %v1434
        %1742 = vmatprep.mubr.bf16.mxu0 %v910
        %1743 = vmatmul.mubr.bf16.gmra.mrb[0].mxu0 %v909
        %v1744 = vpop.f32.mrb[0].mxu0
        %v1745 = vadd.f32 %v1680, %v1744
        %v1746 = vpop.f32.mrb[0].mxu0
        %v1747 = vpop.f32.mrb[0].mxu0
        %v1748 = vadd.f32 %v1683, %v1747
        %v1749 = vpop.f32.mrb[0].mxu0
        %1750 = vmatprep.mubr.bf16.mxu0 %v919
        %1751 = vmatmul.mubr.bf16.gmra.mrb[0].mxu0 %v918
        %v1752 = vpop.f32.mrb[0].mxu0
        %v1753 = vadd.f32 %v1688, %v1752
        %v1754 = vpop.f32.mrb[0].mxu0
        %v1755 = vpop.f32.mrb[0].mxu0
        %v1756 = vadd.f32 %v1691, %v1755
        %v1757 = vpop.f32.mrb[0].mxu0
        %1758 = vmatprep.mubr.bf16.mxu0 %v928
        %1759 = vmatmul.mubr.bf16.gmra.mrb[0].mxu0 %v927
        %v1760 = vpop.f32.mrb[0].mxu0
        %v1761 = vadd.f32 %v1696, %v1760
        %v1762 = vpop.f32.mrb[0].mxu0
        %v1763 = vpop.f32.mrb[0].mxu0
        %v1764 = vadd.f32 %v1699, %v1763
        %v1765 = vpop.f32.mrb[0].mxu0
        %1766 = vmatprep.mubr.bf16.mxu0 %v937
        %1767 = vmatmul.mubr.bf16.gmra.mrb[0].mxu0 %v936
        %v1768 = vpop.f32.mrb[0].mxu0
        %v1769 = vadd.f32 %v1704, %v1768
        %v1770 = vpop.f32.mrb[0].mxu0
        %v1771 = vpop.f32.mrb[0].mxu0
        %v1772 = vadd.f32 %v1707, %v1771
        %v1773 = vpop.f32.mrb[0].mxu0
        %1774 = vdwg.mxu0
        %1775 = vmatprep.subr.bf16.mxu0 0
        %1776 = vmatpush1.bf16.msra.mxu0 %v1435
        %1777 = vmatprep.subr.bf16.mxu0 0
        %1778 = vmatpush1.bf16.msra.mxu0 %v1436
        %1779 = vmatprep.subr.bf16.mxu0 0
        %1780 = vmatpush1.bf16.msra.mxu0 %v1437
        %1781 = vmatprep.subr.bf16.mxu0 0
        %1782 = vmatpush1.bf16.msra.mxu0 %v1438
        %1783 = vmatprep.subr.bf16.mxu0 0
        %1784 = vmatpush1.bf16.msra.mxu0 %v1439
        %1785 = vmatprep.subr.bf16.mxu0 0
        %1786 = vmatpush1.bf16.msra.mxu0 %v1440
        %1787 = vmatprep.subr.bf16.mxu0 0
        %1788 = vmatpush1.bf16.msra.mxu0 %v1441
        %1789 = vmatprep.subr.bf16.mxu0 0
        %1790 = vmatpush1.bf16.msra.mxu0 %v1442
        %1791 = vmatprep.subr.bf16.mxu0 0
        %1792 = vmatpush1.bf16.msra.mxu0 0
        %1793 = vmatprep.subr.bf16.mxu0 0
        %1794 = vmatpush1.bf16.msra.mxu0 0
        %1795 = vmatprep.subr.bf16.mxu0 0
        %1796 = vmatpush1.bf16.msra.mxu0 0
        %1797 = vmatprep.subr.bf16.mxu0 0
        %1798 = vmatpush1.bf16.msra.mxu0 0
        %1799 = vmatprep.subr.bf16.mxu0 0
        %1800 = vmatpush1.bf16.msra.mxu0 0
        %1801 = vmatprep.subr.bf16.mxu0 0
        %1802 = vmatpush1.bf16.msra.mxu0 0
        %1803 = vmatprep.subr.bf16.mxu0 0
        %1804 = vmatpush1.bf16.msra.mxu0 0
        %1805 = vmatprep.subr.bf16.mxu0 0
        %1806 = vmatpush1.bf16.msra.mxu0 0
        %1807 = vmatprep.mubr.bf16.mxu0 0
        %1808 = vmatmul.mubr.bf16.gmra.mrb[0].mxu0 %v911
        %v1809 = vpop.f32.mrb[0].mxu0
        %v1810 = vadd.f32 %v1745, %v1809
        %v1811 = vpop.f32.mrb[0].mxu0
        %v1812 = vpop.f32.mrb[0].mxu0
        %v1813 = vadd.f32 %v1748, %v1812
        %v1814 = vpop.f32.mrb[0].mxu0
        %1815 = vmatprep.mubr.bf16.mxu0 0
        %1816 = vmatmul.mubr.bf16.gmra.mrb[0].mxu0 %v920
        %v1817 = vpop.f32.mrb[0].mxu0
        %v1818 = vadd.f32 %v1753, %v1817
        %v1819 = vpop.f32.mrb[0].mxu0
        %v1820 = vpop.f32.mrb[0].mxu0
        %v1821 = vadd.f32 %v1756, %v1820
        %v1822 = vpop.f32.mrb[0].mxu0
        %1823 = vmatprep.mubr.bf16.mxu0 0
        %1824 = vmatmul.mubr.bf16.gmra.mrb[0].mxu0 %v929
        %v1825 = vpop.f32.mrb[0].mxu0
        %v1826 = vadd.f32 %v1761, %v1825
        %v1827 = vpop.f32.mrb[0].mxu0
        %v1828 = vpop.f32.mrb[0].mxu0
        %v1829 = vadd.f32 %v1764, %v1828
        %v1830 = vpop.f32.mrb[0].mxu0
        %1831 = vmatprep.mubr.bf16.mxu0 0
        %1832 = vmatmul.mubr.bf16.gmra.mrb[0].mxu0 %v938
        %v1833 = vpop.f32.mrb[0].mxu0
        %v1834 = vadd.f32 %v1769, %v1833
        %v1835 = vpop.f32.mrb[0].mxu0
        %v1836 = vpop.f32.mrb[0].mxu0
        %v1837 = vadd.f32 %v1772, %v1836
        %v1838 = vpop.f32.mrb[0].mxu0
        %1839 = vdwg.mxu0
        %v1840 = vmax.f32 %v1810, 0.0
        %v1841 = vmax.f32 %v1813, 0.0
        %v1842 = vmax.f32 %v1818, 0.0
        %v1843 = vmax.f32 %v1821, 0.0
        %v1844 = vmax.f32 %v1826, 0.0
        %v1845 = vmax.f32 %v1829, 0.0
        %v1846 = vmax.f32 %v1834, 0.0
        %v1847 = vmax.f32 %v1837, 0.0
        %v1848 = vld [vmem:[%s2] sm:$0x1]
        %v1850 = vlaneseq
        %v1851 = vshrl.u32 %v1850, 7
        %v1852 = vsub.s32 0, %v1851
        %v1853 = vrot.slane %v1848, %v1852
        %v1855 = vmul.f32 %v1840, %v1853
        %v1856 = vmul.f32 %v1841, %v1853
        %v1857 = vmul.f32 %v1842, %v1853
        %v1858 = vmul.f32 %v1843, %v1853
        %v1859 = vmul.f32 %v1844, %v1853
        %v1860 = vmul.f32 %v1845, %v1853
        %v1861 = vmul.f32 %v1846, %v1853
        %v1862 = vmul.f32 %v1847, %v1853
        %v1863 = vadd.f32 %v1855, %v1856
        %v1864 = vadd.f32 %v1863, %v1857
        %v1865 = vadd.f32 %v1864, %v1858
        %v1866 = vadd.f32 %v1865, %v1859
        %v1867 = vadd.f32 %v1866, %v1860
        %v1868 = vadd.f32 %v1867, %v1861
        %v1869 = vadd.f32 %v1868, %v1862
        %v1870 = vrot.slane %v1869, 4
        %v1871 = vadd.f32 %v1869, %v1870
        %v1872 = vrot.slane %v1871, 2
        %v1873 = vadd.f32 %v1871, %v1872
        %v1874 = vrot.slane %v1873, 1
        %v1875 = vadd.f32 %v1873, %v1874
        %1876 = vadd.xlane.f32.xlu0 %v1875
        %v1877 = vpop.xlane.xlu0 %1876
        %v1878 = vmul.f32 %v1877, 0.015625
        %s1879 = sld [smem:[#allocation3]]
        %v1880 = vstv %s1879
        %v1881 = vadd.f32 %v1878, %v1880
        %1882 = vst [vmem:[%s191] sm:$0xff] %v1881
        %s1883 = sand.u32 %s116, 1
        %s1884 = scalar_lea.sflag [#allocation5], %s1883
        %s1885 = sand.u32 %s116, 1
        %s1886 = smul.addr %s1885, 8
        %s1887 = scalar_lea.vmem [#allocation4], %s1886
        // Predicated region
        $region37: #{tpu_custom_call.1} parent=35 // pred_check
          %p1888 = pneg %p126
        $region38: #{tpu_custom_call.1} parent=35 // pred_check_branch
          %1890 = sbr.rel (%p1888) target = $region40
        $region39: #{tpu_custom_call.1} parent=35 // pred_region
          %s1892 = ssub.s32 128, 128
          %1893 = vsyncadd %s1884, %s1892
          %s1894 = smul.addr %s19, 128
          %s1895 = scalar_lea.hbm %s4, %s1894
          %s1897 = sshll.u32 %s1887, 4
          %s1898 = int_to_ptr.vmem [resolvable:$true] %s1897
          %1900 = dma.vmem_to_hbm [thread:$0]  %s1898, 128, %s1895, %s1884
        $region40: #{tpu_custom_call.1} parent=35 // pred_fallthru
          _
      $region36: #{tpu_custom_call.1} parent=5 // pred_fallthru
        _
      %p1901 = scmp.le.s32.totalorder 2, %s14
      // Predicated region
      $region41: #{tpu_custom_call.1} parent=5 // pred_check
        %p1902 = pneg %p1901
      $region42: #{tpu_custom_call.1} parent=5 // pred_check_branch
        %1904 = sbr.rel (%p1902) target = $region44
      $region43: #{tpu_custom_call.1} parent=5 // pred_region
        %s1905 = ssub.s32 %s14, 2
        // Predicated region
        $region45: #{tpu_custom_call.1} parent=43 // pred_check
          %p1906 = pneg %p132
        $region46: #{tpu_custom_call.1} parent=43 // pred_check_branch
          %1908 = sbr.rel (%p1906) target = $region48
        $region47: #{tpu_custom_call.1} parent=43 // pred_region
          %s1909 = sand.u32 %s117, 1
          %s1910 = scalar_lea.sflag [#allocation5], %s1909
          %s1911 = sand.u32 %s117, 1
          %s1912 = smul.addr %s1911, 8
          %s1913 = scalar_lea.vmem [#allocation4], %s1912
          %1914 = dma.done %s1910, 128
        $region48: #{tpu_custom_call.1} parent=43 // pred_fallthru
          _
      $region44: #{tpu_custom_call.1} parent=5 // pred_fallthru
        _
    $region6: #{tpu_custom_call.1} parent=1 // loop_footer
      %s18 = sadd.s32 1, %s14
    $region7: #{tpu_custom_call.1} parent=1 // loop_footer_branch
      %13 = sbr.rel target = $region3
    $region8: #{tpu_custom_call.1} parent=1 // loop_exit
      _
    %1915 = vsyncpa [#allocation5], 1
    %s1916 = scalar_lea.sflag [#allocation5], 1
    %1917 = vsyncpa %s1916, 1

</llo_original>
